<compile_context>
chip_gen: v5e
topology: v5e:2x2
jax: 0.10.0
libtpu: 0.0.40
codegen_flags: <defaults>
</compile_context>

<pallas_src>
import functools

import jax
import jax.numpy as jnp
from jax.experimental import pallas as pl
from jax.experimental.pallas import tpu as pltpu

NAMES = {
    'vgg11': ['conv1_1', 'relu1_1', 'pool1', 'conv2_1', 'relu2_1', 'pool2', 'conv3_1', 'relu3_1', 'conv3_2',
              'relu3_2', 'pool3', 'conv4_1', 'relu4_1', 'conv4_2', 'relu4_2', 'pool4', 'conv5_1', 'relu5_1',
              'conv5_2', 'relu5_2', 'pool5'],
    'vgg13': ['conv1_1', 'relu1_1', 'conv1_2', 'relu1_2', 'pool1', 'conv2_1', 'relu2_1', 'conv2_2', 'relu2_2',
              'pool2', 'conv3_1', 'relu3_1', 'conv3_2', 'relu3_2', 'pool3', 'conv4_1', 'relu4_1', 'conv4_2',
              'relu4_2', 'pool4', 'conv5_1', 'relu5_1', 'conv5_2', 'relu5_2', 'pool5'],
    'vgg16': ['conv1_1', 'relu1_1', 'conv1_2', 'relu1_2', 'pool1', 'conv2_1', 'relu2_1', 'conv2_2', 'relu2_2',
              'pool2', 'conv3_1', 'relu3_1', 'conv3_2', 'relu3_2', 'conv3_3', 'relu3_3', 'pool3', 'conv4_1',
              'relu4_1', 'conv4_2', 'relu4_2', 'conv4_3', 'relu4_3', 'pool4', 'conv5_1', 'relu5_1', 'conv5_2',
              'relu5_2', 'conv5_3', 'relu5_3', 'pool5'],
    'vgg19': ['conv1_1', 'relu1_1', 'conv1_2', 'relu1_2', 'pool1', 'conv2_1', 'relu2_1', 'conv2_2', 'relu2_2',
              'pool2', 'conv3_1', 'relu3_1', 'conv3_2', 'relu3_2', 'conv3_3', 'relu3_3', 'conv3_4', 'relu3_4',
              'pool3', 'conv4_1', 'relu4_1', 'conv4_2', 'relu4_2', 'conv4_3', 'relu4_3', 'conv4_4', 'relu4_4',
              'pool4', 'conv5_1', 'relu5_1', 'conv5_2', 'relu5_2', 'conv5_3', 'relu5_3', 'conv5_4', 'relu5_4',
              'pool5'],
}

_VGG_BLOCK_CHANNELS = {'1': 64, '2': 128, '3': 256, '4': 512, '5': 512}


# ---------------------------------------------------------------------------
# Tiling helpers
# ---------------------------------------------------------------------------

def _channel_tile(c, cap=256):
    """Largest power-of-two-ish channel tile <= cap that divides c (VGG: 3/64/128/256/512)."""
    t = min(c, cap)
    while c % t != 0:
        t //= 2
    return max(t, 1)


def _row_tile(h):
    # 8-row tiles bound VMEM at real VGG resolutions (remove_pooling keeps full res);
    # whole image if tiny or not divisible.  Tunable.
    return 8 if (h % 8 == 0 and h > 8) else h


# ---------------------------------------------------------------------------
# Pallas kernels
# ---------------------------------------------------------------------------

def _conv3x3_kernel(xm_ref, xt_ref, xb_ref, w_ref, b_ref, o_ref, win_ref, acc_ref,
                    *, tH, W, apply_relu):
    # xm_ref : (1, tH, W+2, cin_t)   main row-tile of the column-padded input
    # xt_ref : (1, 1,  W+2, cin_t)   row above the tile (clamped; ignored at hi==0)
    # xb_ref : (1, 1,  W+2, cin_t)   row below the tile (clamped; ignored at last hi)
    # w_ref  : (9, cin_t, cout_t)    (kh*3+kw, cin, cout), bf16
    # b_ref  : (1, cout_t)           f32 bias
    # o_ref  : (1, tH, W+2, cout_t)  column-padded output tile
    # win_ref: (tH+2, W+2, cin_t)    VMEM window scratch (halo rows assembled here)
    # acc_ref: (tH*W, cout_t)        f32 VMEM accumulator across the cin grid axis
    hi = pl.program_id(1)
    n_h = pl.num_programs(1)
    ci = pl.program_id(3)
    n_ci = pl.num_programs(3)
    cin_t = xm_ref.shape[3]
    cout_t = o_ref.shape[3]

    @pl.when(ci == 0)
    def _():
        acc_ref[...] = jnp.zeros_like(acc_ref)

    # Assemble the (tH+2, W+2, cin_t) input window: main rows + halo rows
    # (zero rows at the image top/bottom boundary).  Column padding is already
    # stored in the activation layout.
    win_ref[1:tH + 1, :, :] = xm_ref[0]

    @pl.when(hi == 0)
    def _():
        win_ref[0:1, :, :] = jnp.zeros((1, W + 2, cin_t), win_ref.dtype)

    @pl.when(hi > 0)
    def _():
        win_ref[0:1, :, :] = xt_ref[0]

    @pl.when(hi == n_h - 1)
    def _():
        win_ref[tH + 1:tH + 2, :, :] = jnp.zeros((1, W + 2, cin_t), win_ref.dtype)

    @pl.when(hi < n_h - 1)
    def _():
        win_ref[tH + 1:tH + 2, :, :] = xb_ref[0]

    # 3x3 conv = 9 shifted (tH*W, cin_t) x (cin_t, cout_t) matmuls, f32 accumulation.
    acc = acc_ref[...]
    for kh in range(3):
        slab = win_ref[kh:kh + tH, :, :]                     # (tH, W+2, cin_t)
        for kw in range(3):
            patch = slab[:, kw:kw + W, :].reshape(tH * W, cin_t)
            acc = acc + jnp.dot(patch, w_ref[kh * 3 + kw],
                                preferred_element_type=jnp.float32)
    acc_ref[...] = acc

    @pl.when(ci == n_ci - 1)
    def _():
        res = acc_ref[...] + b_ref[...]                      # f32 epilogue (bias)
        if apply_relu:                                       # fused ReLU (static flag)
            res = jnp.maximum(res, 0.0)
        res = res.reshape(tH, W, cout_t).astype(o_ref.dtype)
        o_ref[...] = jnp.zeros_like(o_ref)                   # zero column border
        o_ref[0, :, 1:W + 1, :] = res


def conv3x3_pallas(x, w_k, b_k, *, apply_relu):
    """3x3 conv (stride 1, pad 1) + bias (+ optional fused ReLU) on column-padded NHWC.

    x   : (N, H, W+2, Cin)  activations, zero column border stored.
    w_k : (9, Cin, Cout)    weights, (kh*3+kw, cin, cout).
    b_k : (1, Cout)         f32 bias.
    returns (N, H, W+2, Cout) with zero column border.
    """
    n, h, wp2, cin = x.shape
    W = wp2 - 2
    cout = w_k.shape[2]
    cin_t = _channel_tile(cin)
    cout_t = _channel_tile(cout)
    tH = _row_tile(h)
    n_h = h // tH
    grid = (n, n_h, cout // cout_t, cin // cin_t)

    kern = functools.partial(_conv3x3_kernel, tH=tH, W=W, apply_relu=apply_relu)

    itemsize = jnp.dtype(x.dtype).itemsize
    flops = 2 * n * h * W * 9 * cin * cout
    bytes_accessed = int(x.size * itemsize * (cout // cout_t)
                         + w_k.size * jnp.dtype(w_k.dtype).itemsize * (n * n_h)
                         + n * h * wp2 * cout * itemsize)

    return pl.pallas_call(
        kern,
        out_shape=jax.ShapeDtypeStruct((n, h, wp2, cout), x.dtype),
        grid=grid,
        in_specs=[
            # main row tile
            pl.BlockSpec((1, tH, wp2, cin_t),
                         lambda ni, hi, co, ci: (ni, hi, 0, ci)),
            # single halo row above (block size 1 -> block index == row index)
            pl.BlockSpec((1, 1, wp2, cin_t),
                         lambda ni, hi, co, ci: (ni, jnp.maximum(hi * tH - 1, 0), 0, ci)),
            # single halo row below
            pl.BlockSpec((1, 1, wp2, cin_t),
                         lambda ni, hi, co, ci: (ni, jnp.minimum(hi * tH + tH, h - 1), 0, ci)),
            pl.BlockSpec((9, cin_t, cout_t),
                         lambda ni, hi, co, ci: (0, ci, co)),
            pl.BlockSpec((1, cout_t),
                         lambda ni, hi, co, ci: (0, co)),
        ],
        out_specs=pl.BlockSpec((1, tH, wp2, cout_t),
                               lambda ni, hi, co, ci: (ni, hi, 0, co)),
        scratch_shapes=[
            pltpu.VMEM((tH + 2, wp2, cin_t), x.dtype),        # input window (halo)
            pltpu.VMEM((tH * W, cout_t), jnp.float32),        # f32 accumulator
        ],
        compiler_params=pltpu.CompilerParams(
            dimension_semantics=("parallel", "parallel", "parallel", "arbitrary"),
            vmem_limit_bytes=48 * 1024 * 1024),
        cost_estimate=pl.CostEstimate(flops=flops, transcendentals=0,
                                      bytes_accessed=bytes_accessed),
    )(x, x, x, w_k, b_k)


def _relu_kernel(x_ref, o_ref):
    o_ref[...] = jnp.maximum(x_ref[...], 0.0).astype(o_ref.dtype)


def relu_pallas(x):
    """Standalone ReLU (only used when a conv's pre-activation is a requested feature)."""
    n, h, wp2, c = x.shape
    tH = _row_tile(h)
    c_t = _channel_tile(c)
    return pl.pallas_call(
        _relu_kernel,
        out_shape=jax.ShapeDtypeStruct(x.shape, x.dtype),
        grid=(n, h // tH, c // c_t),
        in_specs=[pl.BlockSpec((1, tH, wp2, c_t), lambda ni, hi, ci: (ni, hi, 0, ci))],
        out_specs=pl.BlockSpec((1, tH, wp2, c_t), lambda ni, hi, ci: (ni, hi, 0, ci)),
        compiler_params=pltpu.CompilerParams(
            dimension_semantics=("parallel", "parallel", "parallel")),
    )(x)


# ---------------------------------------------------------------------------
# VGGFeatureExtractor equivalent
# ---------------------------------------------------------------------------

class VGGFeatureExtractorPallas:
    def __init__(self, feature_layers, vgg_type='vgg19', remove_pooling=True, seed=0,
                 compute_dtype=jnp.bfloat16):
        names = NAMES[vgg_type.replace('_bn', '')]
        self.names = names
        self.compute_dtype = compute_dtype
        self.feature_layers = []
        max_idx = 0
        for v in feature_layers:
            idx = names.index(v)
            if idx > max_idx:
                max_idx = idx
            self.feature_layers.append(idx)

        # Build features[:max_idx+1], dropping MaxPool layers when remove_pooling,
        # exactly mirroring the PyTorch module (keys are re-indexed after removal).
        key = jax.random.PRNGKey(seed)
        layers = []
        in_c = 3
        for name in names[:max_idx + 1]:
            if name.startswith('conv'):
                out_c = _VGG_BLOCK_CHANNELS[name[4]]
                key, k_w, k_b = jax.random.split(key, 3)
                w = jax.random.normal(k_w, (out_c, in_c, 3, 3), jnp.float32) * 0.05
                b = jax.random.normal(k_b, (out_c,), jnp.float32) * 0.05
                layers.append(('conv', (w, b)))
                in_c = out_c
            elif name.startswith('relu'):
                layers.append(('relu', None))
            elif name.startswith('pool'):
                if remove_pooling:
                    continue
                layers.append(('pool', None))
        self.layers = layers

        # ImageNet mean/std (PyTorch keeps (1,3,1,1) buffers).
        self.mean = jnp.array([0.485, 0.456, 0.406], jnp.float32)
        self.std = jnp.array([0.229, 0.224, 0.225], jnp.float32)

        # Pre-packed kernel params (glue): (9, cin, cout) weights in compute dtype,
        # with the 1/std normalization scale folded into conv1_1's weights
        # (mean subtraction happens once in the wrapper's layout-setup op, so zero
        # padding stays exactly equivalent to the reference's padded normalized input).
        self.kernel_params = []
        first_conv = True
        for kind, params in self.layers:
            if kind != 'conv':
                self.kernel_params.append(None)
                continue
            w, b = params
            if first_conv:
                w = w / self.std.reshape(1, 3, 1, 1)
                first_conv = False
            wk = jnp.transpose(w, (2, 3, 1, 0)).reshape(9, w.shape[1], w.shape[0])
            wk = wk.astype(compute_dtype)
            bk = b.reshape(1, -1).astype(jnp.float32)
            self.kernel_params.append((wk, bk))

    def _capture(self, x_padded, w):
        # strip column padding, NHWC -> NCHW, f32 (only for requested features).
        return jnp.transpose(x_padded[:, :, 1:w + 1, :], (0, 3, 1, 2)).astype(jnp.float32)

    def __call__(self, x_nchw):
        n, c, h, w = x_nchw.shape
        # One-time layout setup: NCHW -> NHWC, subtract ImageNet mean (the 1/std
        # factor lives in conv1_1's weights), store into column-padded layout.
        x_nhwc = (jnp.transpose(x_nchw, (0, 2, 3, 1)) - self.mean.reshape(1, 1, 1, 3))
        x = jnp.zeros((n, h, w + 2, c), self.compute_dtype)
        x = x.at[:, :, 1:w + 1, :].set(x_nhwc.astype(self.compute_dtype))

        outputs = []
        i, L = 0, len(self.layers)
        while i < L:
            kind, _ = self.layers[i]
            if kind == 'conv':
                wk, bk = self.kernel_params[i]
                want_pre = i in self.feature_layers
                fuse = (not want_pre) and (i + 1 < L) and self.layers[i + 1][0] == 'relu'
                x = conv3x3_pallas(x, wk, bk, apply_relu=fuse)
                if want_pre:
                    outputs.append(self._capture(x, w))
                if fuse:
                    if (i + 1) in self.feature_layers:
                        outputs.append(self._capture(x, w))
                    i += 2
                else:
                    i += 1
            elif kind == 'relu':
                x = relu_pallas(x)
                if i in self.feature_layers:
                    outputs.append(self._capture(x, w))
                i += 1
            else:
                # TODO(synk): nn.MaxPool2d kernel not implemented (remove_pooling=True
                # in this configuration, so no pool layer survives).
                raise NotImplementedError("MaxPool2d not implemented in Pallas path")
        return outputs


# ---------------------------------------------------------------------------
# Pure-JAX reference (for correctness check only)
# ---------------------------------------------------------------------------

def reference_forward(extractor, x_nchw):
    mean = extractor.mean.reshape(1, 3, 1, 1)
    std = extractor.std.reshape(1, 3, 1, 1)
    x = (x_nchw - mean) / std
    outs = []
    for key_idx, (kind, params) in enumerate(extractor.layers):
        if kind == 'conv':
            w, b = params
            x = jax.lax.conv_general_dilated(
                x, w, window_strides=(1, 1), padding=((1, 1), (1, 1)),
                dimension_numbers=('NCHW', 'OIHW', 'NCHW')) + b.reshape(1, -1, 1, 1)
        elif kind == 'relu':
            x = jnp.maximum(x, 0.0)
        if key_idx in extractor.feature_layers:
            outs.append(x)
    return outs


if __name__ == "__main__":
    key = jax.random.PRNGKey(0)
    # Small NCHW input: batch=2, 3 channels (required by mean/std), 16x16 spatial.
    x = jax.random.normal(key, (2, 3, 16, 16), jnp.float32)

    # Feature set exercises: fused conv+relu (relu1_1), pre-activation capture
    # (conv1_2, conv stays unfused), and the standalone relu kernel (relu1_2).
    extractor = VGGFeatureExtractorPallas(
        feature_layers=['relu1_1', 'conv1_2', 'relu1_2'], vgg_type='vgg19',
        remove_pooling=True, seed=0)

    outs = jax.block_until_ready(extractor(x))

    refs = reference_forward(extractor, x)
    assert len(outs) == len(refs), (len(outs), len(refs))
    for o, r in zip(outs, refs):
        assert o.shape == r.shape, (o.shape, r.shape)
        max_err = float(jnp.max(jnp.abs(o - r)))
        assert jnp.allclose(o, r, rtol=5e-2, atol=5e-2), max_err

    print("KERNEL_OK")
</pallas_src>

<mosaic_0001>
module attributes {stable_mosaic.version = 11 : i64} {
  func.func @_conv3x3_kernel(%arg0: i32, %arg1: i32, %arg2: i32, %arg3: i32, %arg4: memref<1x8x18x3xbf16, #tpu.memory_space<vmem>>, %arg5: memref<1x1x18x3xbf16, #tpu.memory_space<vmem>>, %arg6: memref<1x1x18x3xbf16, #tpu.memory_space<vmem>>, %arg7: memref<9x3x64xbf16, #tpu.memory_space<vmem>>, %arg8: memref<1x64xf32, #tpu.memory_space<vmem>>, %arg9: memref<1x8x18x64xbf16, #tpu.memory_space<vmem>>, %arg10: memref<10x18x3xbf16, #tpu.memory_space<vmem>>, %arg11: memref<128x64xf32, #tpu.memory_space<vmem>>) attributes {dimension_semantics = [#tpu.dimension_semantics<parallel>, #tpu.dimension_semantics<parallel>, #tpu.dimension_semantics<parallel>, #tpu.dimension_semantics<arbitrary>], iteration_bounds = array<i64: 2, 2, 1, 1>, scalar_prefetch = 0 : i64, scratch_operands = 2 : i64, tpu.core_type = #tpu.core_type<tc>, window_params = [{transform_indices = @transform_0, window_bounds = array<i64: 1, 8, 18, 3>}, {transform_indices = @transform_1, window_bounds = array<i64: 1, 1, 18, 3>}, {transform_indices = @transform_2, window_bounds = array<i64: 1, 1, 18, 3>}, {transform_indices = @transform_3, window_bounds = array<i64: 9, 3, 64>}, {transform_indices = @transform_4, window_bounds = array<i64: 1, 64>}, {transform_indices = @transform_5, window_bounds = array<i64: 1, 8, 18, 64>}]} {
    %c0_i32 = arith.constant 0 : i32
    %0 = arith.cmpi eq, %arg3, %c0_i32 : i32
    %1 = arith.extui %0 : i1 to i32
    %c0_i32_0 = arith.constant 0 : i32
    %2 = arith.cmpi ne, %1, %c0_i32_0 : i32
    scf.if %2 {
      %cst_56 = arith.constant 0.000000e+00 : f32
      %80 = vector.broadcast %cst_56 : f32 to vector<128x64xf32>
      %c0_57 = arith.constant 0 : index
      %c0_58 = arith.constant 0 : index
      %81 = vector.load %arg11[%c0_57, %c0_58] : memref<128x64xf32, #tpu.memory_space<vmem>>, vector<128x64xf32>
      tpu.vector_store %arg11[%c0_57, %c0_58], %80 {strides = array<i32>} : memref<128x64xf32, #tpu.memory_space<vmem>>, vector<128x64xf32>,
    } else {
    }
    %c0 = arith.constant 0 : index
    %c0_1 = arith.constant 0 : index
    %c0_2 = arith.constant 0 : index
    %c0_3 = arith.constant 0 : index
    %3 = vector.load %arg4[%c0, %c0_1, %c0_2, %c0_3] : memref<1x8x18x3xbf16, #tpu.memory_space<vmem>>, vector<1x8x18x3xbf16>
    %4 = vector.shape_cast %3 : vector<1x8x18x3xbf16> to vector<8x18x3xbf16>
    %c1 = arith.constant 1 : index
    %c0_4 = arith.constant 0 : index
    %c0_5 = arith.constant 0 : index
    %5 = vector.load %arg10[%c1, %c0_4, %c0_5] : memref<10x18x3xbf16, #tpu.memory_space<vmem>>, vector<8x18x3xbf16>
    tpu.vector_store %arg10[%c1, %c0_4, %c0_5], %4 {strides = array<i32>} : memref<10x18x3xbf16, #tpu.memory_space<vmem>>, vector<8x18x3xbf16>,
    %c0_i32_6 = arith.constant 0 : i32
    %6 = arith.cmpi eq, %arg1, %c0_i32_6 : i32
    %7 = arith.extui %6 : i1 to i32
    %c0_i32_7 = arith.constant 0 : i32
    %8 = arith.cmpi ne, %7, %c0_i32_7 : i32
    scf.if %8 {
      %cst_56 = arith.constant 0.000000e+00 : bf16
      %80 = vector.broadcast %cst_56 : bf16 to vector<1x18x3xbf16>
      %c0_57 = arith.constant 0 : index
      %c0_58 = arith.constant 0 : index
      %c0_59 = arith.constant 0 : index
      %81 = vector.load %arg10[%c0_57, %c0_58, %c0_59] : memref<10x18x3xbf16, #tpu.memory_space<vmem>>, vector<1x18x3xbf16>
      tpu.vector_store %arg10[%c0_57, %c0_58, %c0_59], %80 {strides = array<i32>} : memref<10x18x3xbf16, #tpu.memory_space<vmem>>, vector<1x18x3xbf16>,
    } else {
    }
    %c0_i32_8 = arith.constant 0 : i32
    %9 = arith.cmpi sgt, %arg1, %c0_i32_8 : i32
    %10 = arith.extui %9 : i1 to i32
    %c0_i32_9 = arith.constant 0 : i32
    %11 = arith.cmpi ne, %10, %c0_i32_9 : i32
    scf.if %11 {
      %c0_56 = arith.constant 0 : index
      %c0_57 = arith.constant 0 : index
      %c0_58 = arith.constant 0 : index
      %c0_59 = arith.constant 0 : index
      %80 = vector.load %arg5[%c0_56, %c0_57, %c0_58, %c0_59] : memref<1x1x18x3xbf16, #tpu.memory_space<vmem>>, vector<1x1x18x3xbf16>
      %81 = vector.shape_cast %80 : vector<1x1x18x3xbf16> to vector<1x18x3xbf16>
      %c0_60 = arith.constant 0 : index
      %c0_61 = arith.constant 0 : index
      %c0_62 = arith.constant 0 : index
      %82 = vector.load %arg10[%c0_60, %c0_61, %c0_62] : memref<10x18x3xbf16, #tpu.memory_space<vmem>>, vector<1x18x3xbf16>
      tpu.vector_store %arg10[%c0_60, %c0_61, %c0_62], %81 {strides = array<i32>} : memref<10x18x3xbf16, #tpu.memory_space<vmem>>, vector<1x18x3xbf16>,
    } else {
    }
    %c1_i32 = arith.constant 1 : i32
    %12 = arith.cmpi eq, %arg1, %c1_i32 : i32
    %13 = arith.extui %12 : i1 to i32
    %c0_i32_10 = arith.constant 0 : i32
    %14 = arith.cmpi ne, %13, %c0_i32_10 : i32
    scf.if %14 {
      %cst_56 = arith.constant 0.000000e+00 : bf16
      %80 = vector.broadcast %cst_56 : bf16 to vector<1x18x3xbf16>
      %c9 = arith.constant 9 : index
      %c0_57 = arith.constant 0 : index
      %c0_58 = arith.constant 0 : index
      %81 = vector.load %arg10[%c9, %c0_57, %c0_58] : memref<10x18x3xbf16, #tpu.memory_space<vmem>>, vector<1x18x3xbf16>
      tpu.vector_store %arg10[%c9, %c0_57, %c0_58], %80 {strides = array<i32>} : memref<10x18x3xbf16, #tpu.memory_space<vmem>>, vector<1x18x3xbf16>,
    } else {
    }
    %c1_i32_11 = arith.constant 1 : i32
    %15 = arith.cmpi slt, %arg1, %c1_i32_11 : i32
    %16 = arith.extui %15 : i1 to i32
    %c0_i32_12 = arith.constant 0 : i32
    %17 = arith.cmpi ne, %16, %c0_i32_12 : i32
    scf.if %17 {
      %c0_56 = arith.constant 0 : index
      %c0_57 = arith.constant 0 : index
      %c0_58 = arith.constant 0 : index
      %c0_59 = arith.constant 0 : index
      %80 = vector.load %arg6[%c0_56, %c0_57, %c0_58, %c0_59] : memref<1x1x18x3xbf16, #tpu.memory_space<vmem>>, vector<1x1x18x3xbf16>
      %81 = vector.shape_cast %80 : vector<1x1x18x3xbf16> to vector<1x18x3xbf16>
      %c9 = arith.constant 9 : index
      %c0_60 = arith.constant 0 : index
      %c0_61 = arith.constant 0 : index
      %82 = vector.load %arg10[%c9, %c0_60, %c0_61] : memref<10x18x3xbf16, #tpu.memory_space<vmem>>, vector<1x18x3xbf16>
      tpu.vector_store %arg10[%c9, %c0_60, %c0_61], %81 {strides = array<i32>} : memref<10x18x3xbf16, #tpu.memory_space<vmem>>, vector<1x18x3xbf16>,
    } else {
    }
    %c0_13 = arith.constant 0 : index
    %c0_14 = arith.constant 0 : index
    %18 = vector.load %arg11[%c0_13, %c0_14] : memref<128x64xf32, #tpu.memory_space<vmem>>, vector<128x64xf32>
    %c0_15 = arith.constant 0 : index
    %c0_16 = arith.constant 0 : index
    %c0_17 = arith.constant 0 : index
    %19 = vector.load %arg10[%c0_15, %c0_16, %c0_17] : memref<10x18x3xbf16, #tpu.memory_space<vmem>>, vector<8x18x3xbf16>
    %20 = vector.extract_strided_slice %19 {offsets = [0, 0, 0], sizes = [8, 16, 3], strides = [1, 1, 1]} : vector<8x18x3xbf16> to vector<8x16x3xbf16>
    %21 = vector.shape_cast %20 : vector<8x16x3xbf16> to vector<128x3xbf16>
    %c0_18 = arith.constant 0 : index
    %c0_19 = arith.constant 0 : index
    %c0_20 = arith.constant 0 : index
    %22 = vector.load %arg7[%c0_18, %c0_19, %c0_20] : memref<9x3x64xbf16, #tpu.memory_space<vmem>>, vector<1x3x64xbf16>
    %23 = vector.shape_cast %22 : vector<1x3x64xbf16> to vector<3x64xbf16>
    %cst = arith.constant dense<0.000000e+00> : vector<128x64xf32>
    %24 = tpu.matmul %21, %23, %cst {dimension_numbers = #tpu.dot_dimension_numbers<[1], [0], [0], [1], [0, 0, 1, 1], [], []>} : vector<128x3xbf16>, vector<3x64xbf16>, vector<128x64xf32> -> vector<128x64xf32>
    %25 = arith.addf %18, %24 : vector<128x64xf32>
    %26 = vector.extract_strided_slice %19 {offsets = [0, 1, 0], sizes = [8, 16, 3], strides = [1, 1, 1]} : vector<8x18x3xbf16> to vector<8x16x3xbf16>
    %27 = vector.shape_cast %26 : vector<8x16x3xbf16> to vector<128x3xbf16>
    %c1_21 = arith.constant 1 : index
    %c0_22 = arith.constant 0 : index
    %c0_23 = arith.constant 0 : index
    %28 = vector.load %arg7[%c1_21, %c0_22, %c0_23] : memref<9x3x64xbf16, #tpu.memory_space<vmem>>, vector<1x3x64xbf16>
    %29 = vector.shape_cast %28 : vector<1x3x64xbf16> to vector<3x64xbf16>
    %cst_24 = arith.constant dense<0.000000e+00> : vector<128x64xf32>
    %30 = tpu.matmul %27, %29, %cst_24 {dimension_numbers = #tpu.dot_dimension_numbers<[1], [0], [0], [1], [0, 0, 1, 1], [], []>} : vector<128x3xbf16>, vector<3x64xbf16>, vector<128x64xf32> -> vector<128x64xf32>
    %31 = arith.addf %25, %30 : vector<128x64xf32>
    %32 = vector.extract_strided_slice %19 {offsets = [0, 2, 0], sizes = [8, 16, 3], strides = [1, 1, 1]} : vector<8x18x3xbf16> to vector<8x16x3xbf16>
    %33 = vector.shape_cast %32 : vector<8x16x3xbf16> to vector<128x3xbf16>
    %c2 = arith.constant 2 : index
    %c0_25 = arith.constant 0 : index
    %c0_26 = arith.constant 0 : index
    %34 = vector.load %arg7[%c2, %c0_25, %c0_26] : memref<9x3x64xbf16, #tpu.memory_space<vmem>>, vector<1x3x64xbf16>
    %35 = vector.shape_cast %34 : vector<1x3x64xbf16> to vector<3x64xbf16>
    %cst_27 = arith.constant dense<0.000000e+00> : vector<128x64xf32>
    %36 = tpu.matmul %33, %35, %cst_27 {dimension_numbers = #tpu.dot_dimension_numbers<[1], [0], [0], [1], [0, 0, 1, 1], [], []>} : vector<128x3xbf16>, vector<3x64xbf16>, vector<128x64xf32> -> vector<128x64xf32>
    %37 = arith.addf %31, %36 : vector<128x64xf32>
    %c1_28 = arith.constant 1 : index
    %c0_29 = arith.constant 0 : index
    %c0_30 = arith.constant 0 : index
    %38 = vector.load %arg10[%c1_28, %c0_29, %c0_30] : memref<10x18x3xbf16, #tpu.memory_space<vmem>>, vector<8x18x3xbf16>
    %39 = vector.extract_strided_slice %38 {offsets = [0, 0, 0], sizes = [8, 16, 3], strides = [1, 1, 1]} : vector<8x18x3xbf16> to vector<8x16x3xbf16>
    %40 = vector.shape_cast %39 : vector<8x16x3xbf16> to vector<128x3xbf16>
    %c3 = arith.constant 3 : index
    %c0_31 = arith.constant 0 : index
    %c0_32 = arith.constant 0 : index
    %41 = vector.load %arg7[%c3, %c0_31, %c0_32] : memref<9x3x64xbf16, #tpu.memory_space<vmem>>, vector<1x3x64xbf16>
    %42 = vector.shape_cast %41 : vector<1x3x64xbf16> to vector<3x64xbf16>
    %cst_33 = arith.constant dense<0.000000e+00> : vector<128x64xf32>
    %43 = tpu.matmul %40, %42, %cst_33 {dimension_numbers = #tpu.dot_dimension_numbers<[1], [0], [0], [1], [0, 0, 1, 1], [], []>} : vector<128x3xbf16>, vector<3x64xbf16>, vector<128x64xf32> -> vector<128x64xf32>
    %44 = arith.addf %37, %43 : vector<128x64xf32>
    %45 = vector.extract_strided_slice %38 {offsets = [0, 1, 0], sizes = [8, 16, 3], strides = [1, 1, 1]} : vector<8x18x3xbf16> to vector<8x16x3xbf16>
    %46 = vector.shape_cast %45 : vector<8x16x3xbf16> to vector<128x3xbf16>
    %c4 = arith.constant 4 : index
    %c0_34 = arith.constant 0 : index
    %c0_35 = arith.constant 0 : index
    %47 = vector.load %arg7[%c4, %c0_34, %c0_35] : memref<9x3x64xbf16, #tpu.memory_space<vmem>>, vector<1x3x64xbf16>
    %48 = vector.shape_cast %47 : vector<1x3x64xbf16> to vector<3x64xbf16>
    %cst_36 = arith.constant dense<0.000000e+00> : vector<128x64xf32>
    %49 = tpu.matmul %46, %48, %cst_36 {dimension_numbers = #tpu.dot_dimension_numbers<[1], [0], [0], [1], [0, 0, 1, 1], [], []>} : vector<128x3xbf16>, vector<3x64xbf16>, vector<128x64xf32> -> vector<128x64xf32>
    %50 = arith.addf %44, %49 : vector<128x64xf32>
    %51 = vector.extract_strided_slice %38 {offsets = [0, 2, 0], sizes = [8, 16, 3], strides = [1, 1, 1]} : vector<8x18x3xbf16> to vector<8x16x3xbf16>
    %52 = vector.shape_cast %51 : vector<8x16x3xbf16> to vector<128x3xbf16>
    %c5 = arith.constant 5 : index
    %c0_37 = arith.constant 0 : index
    %c0_38 = arith.constant 0 : index
    %53 = vector.load %arg7[%c5, %c0_37, %c0_38] : memref<9x3x64xbf16, #tpu.memory_space<vmem>>, vector<1x3x64xbf16>
    %54 = vector.shape_cast %53 : vector<1x3x64xbf16> to vector<3x64xbf16>
    %cst_39 = arith.constant dense<0.000000e+00> : vector<128x64xf32>
    %55 = tpu.matmul %52, %54, %cst_39 {dimension_numbers = #tpu.dot_dimension_numbers<[1], [0], [0], [1], [0, 0, 1, 1], [], []>} : vector<128x3xbf16>, vector<3x64xbf16>, vector<128x64xf32> -> vector<128x64xf32>
    %56 = arith.addf %50, %55 : vector<128x64xf32>
    %c2_40 = arith.constant 2 : index
    %c0_41 = arith.constant 0 : index
    %c0_42 = arith.constant 0 : index
    %57 = vector.load %arg10[%c2_40, %c0_41, %c0_42] : memref<10x18x3xbf16, #tpu.memory_space<vmem>>, vector<8x18x3xbf16>
    %58 = vector.extract_strided_slice %57 {offsets = [0, 0, 0], sizes = [8, 16, 3], strides = [1, 1, 1]} : vector<8x18x3xbf16> to vector<8x16x3xbf16>
    %59 = vector.shape_cast %58 : vector<8x16x3xbf16> to vector<128x3xbf16>
    %c6 = arith.constant 6 : index
    %c0_43 = arith.constant 0 : index
    %c0_44 = arith.constant 0 : index
    %60 = vector.load %arg7[%c6, %c0_43, %c0_44] : memref<9x3x64xbf16, #tpu.memory_space<vmem>>, vector<1x3x64xbf16>
    %61 = vector.shape_cast %60 : vector<1x3x64xbf16> to vector<3x64xbf16>
    %cst_45 = arith.constant dense<0.000000e+00> : vector<128x64xf32>
    %62 = tpu.matmul %59, %61, %cst_45 {dimension_numbers = #tpu.dot_dimension_numbers<[1], [0], [0], [1], [0, 0, 1, 1], [], []>} : vector<128x3xbf16>, vector<3x64xbf16>, vector<128x64xf32> -> vector<128x64xf32>
    %63 = arith.addf %56, %62 : vector<128x64xf32>
    %64 = vector.extract_strided_slice %57 {offsets = [0, 1, 0], sizes = [8, 16, 3], strides = [1, 1, 1]} : vector<8x18x3xbf16> to vector<8x16x3xbf16>
    %65 = vector.shape_cast %64 : vector<8x16x3xbf16> to vector<128x3xbf16>
    %c7 = arith.constant 7 : index
    %c0_46 = arith.constant 0 : index
    %c0_47 = arith.constant 0 : index
    %66 = vector.load %arg7[%c7, %c0_46, %c0_47] : memref<9x3x64xbf16, #tpu.memory_space<vmem>>, vector<1x3x64xbf16>
    %67 = vector.shape_cast %66 : vector<1x3x64xbf16> to vector<3x64xbf16>
    %cst_48 = arith.constant dense<0.000000e+00> : vector<128x64xf32>
    %68 = tpu.matmul %65, %67, %cst_48 {dimension_numbers = #tpu.dot_dimension_numbers<[1], [0], [0], [1], [0, 0, 1, 1], [], []>} : vector<128x3xbf16>, vector<3x64xbf16>, vector<128x64xf32> -> vector<128x64xf32>
    %69 = arith.addf %63, %68 : vector<128x64xf32>
    %70 = vector.extract_strided_slice %57 {offsets = [0, 2, 0], sizes = [8, 16, 3], strides = [1, 1, 1]} : vector<8x18x3xbf16> to vector<8x16x3xbf16>
    %71 = vector.shape_cast %70 : vector<8x16x3xbf16> to vector<128x3xbf16>
    %c8 = arith.constant 8 : index
    %c0_49 = arith.constant 0 : index
    %c0_50 = arith.constant 0 : index
    %72 = vector.load %arg7[%c8, %c0_49, %c0_50] : memref<9x3x64xbf16, #tpu.memory_space<vmem>>, vector<1x3x64xbf16>
    %73 = vector.shape_cast %72 : vector<1x3x64xbf16> to vector<3x64xbf16>
    %cst_51 = arith.constant dense<0.000000e+00> : vector<128x64xf32>
    %74 = tpu.matmul %71, %73, %cst_51 {dimension_numbers = #tpu.dot_dimension_numbers<[1], [0], [0], [1], [0, 0, 1, 1], [], []>} : vector<128x3xbf16>, vector<3x64xbf16>, vector<128x64xf32> -> vector<128x64xf32>
    %75 = arith.addf %69, %74 : vector<128x64xf32>
    %c0_52 = arith.constant 0 : index
    %c0_53 = arith.constant 0 : index
    %76 = vector.load %arg11[%c0_52, %c0_53] : memref<128x64xf32, #tpu.memory_space<vmem>>, vector<128x64xf32>
    tpu.vector_store %arg11[%c0_52, %c0_53], %75 {strides = array<i32>} : memref<128x64xf32, #tpu.memory_space<vmem>>, vector<128x64xf32>,
    %c0_i32_54 = arith.constant 0 : i32
    %77 = arith.cmpi eq, %arg3, %c0_i32_54 : i32
    %78 = arith.extui %77 : i1 to i32
    %c0_i32_55 = arith.constant 0 : i32
    %79 = arith.cmpi ne, %78, %c0_i32_55 : i32
    scf.if %79 {
      %c0_56 = arith.constant 0 : index
      %c0_57 = arith.constant 0 : index
      %80 = vector.load %arg11[%c0_56, %c0_57] : memref<128x64xf32, #tpu.memory_space<vmem>>, vector<128x64xf32>
      %c0_58 = arith.constant 0 : index
      %c0_59 = arith.constant 0 : index
      %81 = vector.load %arg8[%c0_58, %c0_59] : memref<1x64xf32, #tpu.memory_space<vmem>>, vector<1x64xf32>
      %82 = vector.broadcast %81 : vector<1x64xf32> to vector<128x64xf32>
      %83 = arith.addf %80, %82 : vector<128x64xf32>
      %cst_60 = arith.constant 0.000000e+00 : f32
      %84 = vector.broadcast %cst_60 : f32 to vector<128x64xf32>
      %85 = arith.maximumf %83, %84 : vector<128x64xf32>
      %86 = vector.shape_cast %85 : vector<128x64xf32> to vector<8x16x64xf32>
      %87 = arith.truncf %86 : vector<8x16x64xf32> to vector<8x16x64xbf16>
      %cst_61 = arith.constant 0.000000e+00 : bf16
      %88 = vector.broadcast %cst_61 : bf16 to vector<1x8x18x64xbf16>
      %c0_62 = arith.constant 0 : index
      %c0_63 = arith.constant 0 : index
      %c0_64 = arith.constant 0 : index
      %c0_65 = arith.constant 0 : index
      %89 = vector.load %arg9[%c0_62, %c0_63, %c0_64, %c0_65] : memref<1x8x18x64xbf16, #tpu.memory_space<vmem>>, vector<1x8x18x64xbf16>
      tpu.vector_store %arg9[%c0_62, %c0_63, %c0_64, %c0_65], %88 {strides = array<i32>} : memref<1x8x18x64xbf16, #tpu.memory_space<vmem>>, vector<1x8x18x64xbf16>,
      %c0_66 = arith.constant 0 : index
      %c0_67 = arith.constant 0 : index
      %c1_68 = arith.constant 1 : index
      %c0_69 = arith.constant 0 : index
      %90 = vector.load %arg9[%c0_66, %c0_67, %c1_68, %c0_69] : memref<1x8x18x64xbf16, #tpu.memory_space<vmem>>, vector<1x8x16x64xbf16>
      %91 = vector.shape_cast %90 : vector<1x8x16x64xbf16> to vector<8x16x64xbf16>
      %92 = vector.shape_cast %87 : vector<8x16x64xbf16> to vector<1x8x16x64xbf16>
      tpu.vector_store %arg9[%c0_66, %c0_67, %c1_68, %c0_69], %92 {strides = array<i32>} : memref<1x8x18x64xbf16, #tpu.memory_space<vmem>>, vector<1x8x16x64xbf16>,
    } else {
    }
    return
  }
  func.func @transform_0(%arg0: i32, %arg1: i32, %arg2: i32, %arg3: i32) -> (i32, i32, i32, i32) {
    %c0_i32 = arith.constant 0 : i32
    %c0_i32_0 = arith.constant 0 : i32
    return %arg0, %arg1, %c0_i32, %arg3 : i32, i32, i32, i32
  }
  func.func @transform_1(%arg0: i32, %arg1: i32, %arg2: i32, %arg3: i32) -> (i32, i32, i32, i32) {
    %c8_i32 = arith.constant 8 : i32
    %0 = arith.muli %arg1, %c8_i32 : i32
    %c1_i32 = arith.constant 1 : i32
    %1 = arith.subi %0, %c1_i32 : i32
    %c0_i32 = arith.constant 0 : i32
    %2 = arith.maxsi %1, %c0_i32 : i32
    %c0_i32_0 = arith.constant 0 : i32
    %c0_i32_1 = arith.constant 0 : i32
    return %arg0, %2, %c0_i32_0, %arg3 : i32, i32, i32, i32
  }
  func.func @transform_2(%arg0: i32, %arg1: i32, %arg2: i32, %arg3: i32) -> (i32, i32, i32, i32) {
    %c8_i32 = arith.constant 8 : i32
    %0 = arith.muli %arg1, %c8_i32 : i32
    %c8_i32_0 = arith.constant 8 : i32
    %1 = arith.addi %0, %c8_i32_0 : i32
    %c15_i32 = arith.constant 15 : i32
    %2 = arith.minsi %1, %c15_i32 : i32
    %c0_i32 = arith.constant 0 : i32
    %c0_i32_1 = arith.constant 0 : i32
    return %arg0, %2, %c0_i32, %arg3 : i32, i32, i32, i32
  }
  func.func @transform_3(%arg0: i32, %arg1: i32, %arg2: i32, %arg3: i32) -> (i32, i32, i32) {
    %c0_i32 = arith.constant 0 : i32
    %c0_i32_0 = arith.constant 0 : i32
    return %c0_i32, %arg3, %arg2 : i32, i32, i32
  }
  func.func @transform_4(%arg0: i32, %arg1: i32, %arg2: i32, %arg3: i32) -> (i32, i32) {
    %c0_i32 = arith.constant 0 : i32
    %c0_i32_0 = arith.constant 0 : i32
    return %c0_i32, %arg2 : i32, i32
  }
  func.func @transform_5(%arg0: i32, %arg1: i32, %arg2: i32, %arg3: i32) -> (i32, i32, i32, i32) {
    %c0_i32 = arith.constant 0 : i32
    %c0_i32_0 = arith.constant 0 : i32
    return %arg0, %arg1, %c0_i32, %arg2 : i32, i32, i32, i32
  }
}

</mosaic_0001>

<llo_original>
// kernel: tpu_custom_call.1
$region0: #{tpu_custom_call.1}
  #allocation0 [shape = 'u32[]', space=smem, size = 0x4, offset = 0x4, fixed_abs, tag = 'smem constant byte address 0x4 - core index']
  #allocation1 [shape = 'u32[72,128]{1,0:T(1,128)}', space=vmem, size = 0x9000, scoped, tag = 'internal scratch']
  #allocation2 [shape = 'bf16[10,18,3]{2,1,0:T(8,128)(2,1)}', space=vmem, size = 0xf000, scoped, tag = 'scratch operand']
  #allocation3 [shape = 'f32[128,64]{1,0:T(8,128)}', space=vmem, size = 0x10000, scoped, tag = 'scratch operand']
  %s0 = inlined_call_operand.vmem [shape: bf16[2,16,18,3], index: 0, kind: input, shape index: {}]
  %s1 = inlined_call_operand.vmem [shape: bf16[2,16,18,3], index: 1, kind: input, shape index: {}]
  %s2 = inlined_call_operand.vmem [shape: bf16[2,16,18,3], index: 2, kind: input, shape index: {}]
  %s3 = inlined_call_operand.vmem [shape: bf16[9,3,64], index: 3, kind: input, shape index: {}]
  %s4 = inlined_call_operand.vmem [shape: f32[1,64], index: 4, kind: input, shape index: {}]
  %s5 = inlined_call_operand.vmem [shape: bf16[2,16,18,64], index: 5, kind: output, shape index: {}]
  %s6 = sld [smem:[#allocation0]]
  $region77: #{tpu_custom_call.1} parent=0
    _
  %s8 = ssub.s32 1, %s6
  %s9 = scalar_select 0, %s8, %s6
  loop: start=0, step=1, limit=6
  $region2: #{tpu_custom_call.1} parent=0 // loop_pre_header
    _
  $region3: #{tpu_custom_call.1} parent=0 // loop_header
    %s11 = sphi 0, %s15
    %p12 = scmp.ge.s32.totalorder %s11, 6
    %s18 = sphi 0, %s44
    %s19 = sphi 0, %s40
    %s20 = sphi 0, %s36
    %s21 = sphi 0, %s32
    %s22 = sphi 0, %s18
    %s23 = sphi 0, %s19
    %s24 = sphi 0, %s20
    %s25 = sphi 0, %s21
    %s26 = sphi 0, %s22
    %s27 = sphi 0, %s23
    %s28 = sphi 0, %s24
    %s29 = sphi 0, %s25
    %s51 = sphi 0, %s53
    %s54 = sphi 0, %s51
    %s55 = sphi 0, %s54
    %s71 = sphi 0, %s55
    %s89 = sphi 0, %s91
    %s92 = sphi 0, %s89
    %s93 = sphi 0, %s92
    %s109 = sphi 0, %s93
    %s127 = sphi 0, %s129
    %s130 = sphi 0, %s127
    %s131 = sphi 0, %s130
    %s147 = sphi 0, %s131
    %s155 = sphi 0, %s157
    %s158 = sphi 0, %s155
    %s159 = sphi 0, %s158
    %s175 = sphi 0, %s159
    %s181 = sphi 0, %s183
    %s184 = sphi 0, %s181
    %s185 = sphi 0, %s184
    %s201 = sphi 0, %s185
    %s211 = sphi 0, %s213
    %s214 = sphi 0, %s211
    %s215 = sphi 0, %s214
    %s231 = sphi 0, %s215
  $region4: #{tpu_custom_call.1} parent=0 // loop_header_branch
    %14 = sbr.rel (%p12) target = $region8
  $region5: #{tpu_custom_call.1} parent=0 // loop_body
    %s16 = ssub.s32 %s11, 1
    %s17 = ssub.s32 %s11, 2
    %s30 = sadd.s32 1, %s21
    %p31 = scmp.ge.s32.totalorder %s30, 1
    %s32 = scalar_select %p31, 0, %s30
    %s33 = sadd.s32 1, %s20
    %s34 = scalar_select %p31, %s33, %s20
    %p35 = scmp.ge.s32.totalorder %s34, 1
    %s36 = scalar_select %p35, 0, %s34
    %s37 = sadd.s32 1, %s19
    %s38 = scalar_select %p35, %s37, %s19
    %p39 = scmp.ge.s32.totalorder %s38, 2
    %s40 = scalar_select %p39, 0, %s38
    %s41 = sadd.s32 1, %s18
    %s42 = scalar_select %p39, %s41, %s18
    %p43 = scmp.ge.s32.totalorder %s42, 2
    %s44 = scalar_select %p43, 0, %s42
    %s45 = ssub.s32 %s18, %s44
    %s46 = ssub.s32 %s19, %s40
    %s47 = sor.u32 %s45, %s46
    %s48 = ssub.s32 %s21, %s32
    %s49 = sor.u32 %s47, %s48
    %p50 = scmp.eq.s32.totalorder %s49, 0
    %s52 = sadd.s32 %s51, 1
    %s53 = scalar_select %p50, %s51, %s52
    %p56 = pneg %p50
    %p57 = scmp.eq.s32.totalorder %s11, 3
    %p58 = por %p56, %p57
    %p59 = scmp.ne.s32.totalorder %s51, %s54
    %p60 = scmp.eq.s32.totalorder %s11, 0
    %p61 = por %p59, %p60
    %p62 = scmp.ne.s32.totalorder %s51, %s54
    %p63 = scmp.eq.s32.totalorder %s16, 3
    %p64 = por %p62, %p63
    %p65 = scmp.ne.s32.totalorder %s54, %s55
    %p66 = scmp.eq.s32.totalorder %s16, 0
    %p67 = por %p65, %p66
    %p68 = scmp.ne.s32.totalorder %s54, %s55
    %p69 = scmp.eq.s32.totalorder %s17, 3
    %p70 = por %p68, %p69
    %p72 = scmp.ne.s32.totalorder %s55, %s71
    %p73 = scmp.eq.s32.totalorder %s17, 0
    %p74 = por %p72, %p73
    %s75 = smul.u32 %s19, 8
    %s76 = ssub.s32 %s75, 1
    %p77 = scmp.gt.s32.totalorder %s76, 0
    %s78 = scalar_select %p77, %s76, 0
    %s79 = smul.u32 %s40, 8
    %s80 = ssub.s32 %s79, 1
    %p81 = scmp.gt.s32.totalorder %s80, 0
    %s82 = scalar_select %p81, %s80, 0
    %s83 = ssub.s32 %s18, %s44
    %s84 = ssub.s32 %s78, %s82
    %s85 = sor.u32 %s83, %s84
    %s86 = ssub.s32 %s21, %s32
    %s87 = sor.u32 %s85, %s86
    %p88 = scmp.eq.s32.totalorder %s87, 0
    %s90 = sadd.s32 %s89, 1
    %s91 = scalar_select %p88, %s89, %s90
    %p94 = pneg %p88
    %p95 = scmp.eq.s32.totalorder %s11, 3
    %p96 = por %p94, %p95
    %p97 = scmp.ne.s32.totalorder %s89, %s92
    %p98 = scmp.eq.s32.totalorder %s11, 0
    %p99 = por %p97, %p98
    %p100 = scmp.ne.s32.totalorder %s89, %s92
    %p101 = scmp.eq.s32.totalorder %s16, 3
    %p102 = por %p100, %p101
    %p103 = scmp.ne.s32.totalorder %s92, %s93
    %p104 = scmp.eq.s32.totalorder %s16, 0
    %p105 = por %p103, %p104
    %p106 = scmp.ne.s32.totalorder %s92, %s93
    %p107 = scmp.eq.s32.totalorder %s17, 3
    %p108 = por %p106, %p107
    %p110 = scmp.ne.s32.totalorder %s93, %s109
    %p111 = scmp.eq.s32.totalorder %s17, 0
    %p112 = por %p110, %p111
    %s113 = smul.u32 %s19, 8
    %s114 = sadd.s32 %s113, 8
    %p115 = scmp.lt.s32.totalorder %s114, 15
    %s116 = scalar_select %p115, %s114, 15
    %s117 = smul.u32 %s40, 8
    %s118 = sadd.s32 %s117, 8
    %p119 = scmp.lt.s32.totalorder %s118, 15
    %s120 = scalar_select %p119, %s118, 15
    %s121 = ssub.s32 %s18, %s44
    %s122 = ssub.s32 %s116, %s120
    %s123 = sor.u32 %s121, %s122
    %s124 = ssub.s32 %s21, %s32
    %s125 = sor.u32 %s123, %s124
    %p126 = scmp.eq.s32.totalorder %s125, 0
    %s128 = sadd.s32 %s127, 1
    %s129 = scalar_select %p126, %s127, %s128
    %p132 = pneg %p126
    %p133 = scmp.eq.s32.totalorder %s11, 3
    %p134 = por %p132, %p133
    %p135 = scmp.ne.s32.totalorder %s127, %s130
    %p136 = scmp.eq.s32.totalorder %s11, 0
    %p137 = por %p135, %p136
    %p138 = scmp.ne.s32.totalorder %s127, %s130
    %p139 = scmp.eq.s32.totalorder %s16, 3
    %p140 = por %p138, %p139
    %p141 = scmp.ne.s32.totalorder %s130, %s131
    %p142 = scmp.eq.s32.totalorder %s16, 0
    %p143 = por %p141, %p142
    %p144 = scmp.ne.s32.totalorder %s130, %s131
    %p145 = scmp.eq.s32.totalorder %s17, 3
    %p146 = por %p144, %p145
    %p148 = scmp.ne.s32.totalorder %s131, %s147
    %p149 = scmp.eq.s32.totalorder %s17, 0
    %p150 = por %p148, %p149
    %s151 = ssub.s32 %s21, %s32
    %s152 = ssub.s32 %s20, %s36
    %s153 = sor.u32 %s151, %s152
    %p154 = scmp.eq.s32.totalorder %s153, 0
    %s156 = sadd.s32 %s155, 1
    %s157 = scalar_select %p154, %s155, %s156
    %p160 = pneg %p154
    %p161 = scmp.eq.s32.totalorder %s11, 3
    %p162 = por %p160, %p161
    %p163 = scmp.ne.s32.totalorder %s155, %s158
    %p164 = scmp.eq.s32.totalorder %s11, 0
    %p165 = por %p163, %p164
    %p166 = scmp.ne.s32.totalorder %s155, %s158
    %p167 = scmp.eq.s32.totalorder %s16, 3
    %p168 = por %p166, %p167
    %p169 = scmp.ne.s32.totalorder %s158, %s159
    %p170 = scmp.eq.s32.totalorder %s16, 0
    %p171 = por %p169, %p170
    %p172 = scmp.ne.s32.totalorder %s158, %s159
    %p173 = scmp.eq.s32.totalorder %s17, 3
    %p174 = por %p172, %p173
    %p176 = scmp.ne.s32.totalorder %s159, %s175
    %p177 = scmp.eq.s32.totalorder %s17, 0
    %p178 = por %p176, %p177
    %s179 = ssub.s32 %s20, %s36
    %p180 = scmp.eq.s32.totalorder %s179, 0
    %s182 = sadd.s32 %s181, 1
    %s183 = scalar_select %p180, %s181, %s182
    %p186 = pneg %p180
    %p187 = scmp.eq.s32.totalorder %s11, 3
    %p188 = por %p186, %p187
    %p189 = scmp.ne.s32.totalorder %s181, %s184
    %p190 = scmp.eq.s32.totalorder %s11, 0
    %p191 = por %p189, %p190
    %p192 = scmp.ne.s32.totalorder %s181, %s184
    %p193 = scmp.eq.s32.totalorder %s16, 3
    %p194 = por %p192, %p193
    %p195 = scmp.ne.s32.totalorder %s184, %s185
    %p196 = scmp.eq.s32.totalorder %s16, 0
    %p197 = por %p195, %p196
    %p198 = scmp.ne.s32.totalorder %s184, %s185
    %p199 = scmp.eq.s32.totalorder %s17, 3
    %p200 = por %p198, %p199
    %p202 = scmp.ne.s32.totalorder %s185, %s201
    %p203 = scmp.eq.s32.totalorder %s17, 0
    %p204 = por %p202, %p203
    %s205 = ssub.s32 %s18, %s44
    %s206 = ssub.s32 %s19, %s40
    %s207 = sor.u32 %s205, %s206
    %s208 = ssub.s32 %s20, %s36
    %s209 = sor.u32 %s207, %s208
    %p210 = scmp.eq.s32.totalorder %s209, 0
    %s212 = sadd.s32 %s211, 1
    %s213 = scalar_select %p210, %s211, %s212
    %p216 = pneg %p210
    %p217 = scmp.eq.s32.totalorder %s11, 3
    %p218 = por %p216, %p217
    %p219 = scmp.ne.s32.totalorder %s211, %s214
    %p220 = scmp.eq.s32.totalorder %s11, 0
    %p221 = por %p219, %p220
    %p222 = scmp.ne.s32.totalorder %s211, %s214
    %p223 = scmp.eq.s32.totalorder %s16, 3
    %p224 = por %p222, %p223
    %p225 = scmp.ne.s32.totalorder %s214, %s215
    %p226 = scmp.eq.s32.totalorder %s16, 0
    %p227 = por %p225, %p226
    %p228 = scmp.ne.s32.totalorder %s214, %s215
    %p229 = scmp.eq.s32.totalorder %s17, 3
    %p230 = por %p228, %p229
    %p232 = scmp.ne.s32.totalorder %s215, %s231
    %p233 = scmp.eq.s32.totalorder %s17, 0
    %p234 = por %p232, %p233
    %p235 = scmp.le.s32.totalorder 1, %s11
    %p236 = scmp.lt.s32.totalorder %s11, 5
    %p237 = pnand %p235, %p236
    %p238 = pneg %p237
    // Predicated region
    $region9: #{tpu_custom_call.1} parent=5 // pred_check
      _
    $region10: #{tpu_custom_call.1} parent=5 // pred_check_branch
      %240 = sbr.rel (%p237) target = $region12
    $region11: #{tpu_custom_call.1} parent=5 // pred_region
      %s241 = ssub.s32 %s11, 1
      // Predicated region
      $region13: #{tpu_custom_call.1} parent=11 // pred_check
        %p242 = pneg %p171
      $region14: #{tpu_custom_call.1} parent=11 // pred_check_branch
        %244 = sbr.rel (%p242) target = $region16
      $region15: #{tpu_custom_call.1} parent=11 // pred_region
        %p245 = scmp.lt.s32.totalorder %s25, 0
        %s246 = scalar_select %p245, %s25, 0
        %p247 = scmp.lt.s32.totalorder %s24, 0
        %s248 = scalar_select %p247, %s24, 0
        %s249 = sadd.s32 %s248, %s246
        %s250 = smul.addr %s249, 2
        %s251 = scalar_lea.vmem %s3, %s250
      $region16: #{tpu_custom_call.1} parent=11 // pred_fallthru
        _
      // Predicated region
      $region17: #{tpu_custom_call.1} parent=11 // pred_check
        %p252 = pneg %p197
      $region18: #{tpu_custom_call.1} parent=11 // pred_check_branch
        %254 = sbr.rel (%p252) target = $region20
      $region19: #{tpu_custom_call.1} parent=11 // pred_region
        %p255 = scmp.lt.s32.totalorder %s24, 0
        %s256 = scalar_select %p255, %s24, 0
        %s257 = scalar_lea.vmem %s4, %s256
      $region20: #{tpu_custom_call.1} parent=11 // pred_fallthru
        _
    $region12: #{tpu_custom_call.1} parent=5 // pred_fallthru
      _
    %p258 = scmp.lt.s32.totalorder %s11, 4
    // Predicated region
    $region21: #{tpu_custom_call.1} parent=5 // pred_check
      %p259 = pneg %p258
    $region22: #{tpu_custom_call.1} parent=5 // pred_check_branch
      %261 = sbr.rel (%p259) target = $region24
    $region23: #{tpu_custom_call.1} parent=5 // pred_region
      // Predicated region
      $region25: #{tpu_custom_call.1} parent=23 // pred_check
        %p262 = pneg %p61
      $region26: #{tpu_custom_call.1} parent=23 // pred_check_branch
        %264 = sbr.rel (%p262) target = $region28
      $region27: #{tpu_custom_call.1} parent=23 // pred_region
        %s265 = smul.u32 8, %s19
        %p266 = scmp.lt.s32.totalorder %s18, 1
        %s267 = scalar_select %p266, %s18, 1
        %p268 = scmp.lt.s32.totalorder %s265, 15
        %s269 = scalar_select %p268, %s265, 15
        %p270 = scmp.lt.s32.totalorder %s21, 0
        %s271 = scalar_select %p270, %s21, 0
        %s272 = smul.addr %s269, 3
        %s273 = sadd.s32 %s271, %s272
        %s274 = smul.addr %s267, 48
        %s275 = sadd.s32 %s273, %s274
        %s276 = smul.addr %s275, 4
        %s277 = scalar_lea.vmem %s0, %s276
        %s278 = smul.u32 8, %s19
      $region28: #{tpu_custom_call.1} parent=23 // pred_fallthru
        _
      // Predicated region
      $region29: #{tpu_custom_call.1} parent=23 // pred_check
        %p279 = pneg %p99
      $region30: #{tpu_custom_call.1} parent=23 // pred_check_branch
        %281 = sbr.rel (%p279) target = $region32
      $region31: #{tpu_custom_call.1} parent=23 // pred_region
        %s282 = smul.u32 %s19, 8
        %s283 = ssub.s32 %s282, 1
        %p284 = scmp.gt.s32.totalorder %s283, 0
        %s285 = scalar_select %p284, %s283, 0
        %p286 = scmp.lt.s32.totalorder %s18, 1
        %s287 = scalar_select %p286, %s18, 1
        %p288 = scmp.lt.s32.totalorder %s285, 15
        %s289 = scalar_select %p288, %s285, 15
        %p290 = scmp.lt.s32.totalorder %s21, 0
        %s291 = scalar_select %p290, %s21, 0
        %s292 = smul.addr %s289, 3
        %s293 = sadd.s32 %s291, %s292
        %s294 = smul.addr %s287, 48
        %s295 = sadd.s32 %s293, %s294
        %s296 = smul.addr %s295, 4
        %s297 = scalar_lea.vmem %s1, %s296
        %s298 = smul.u32 %s19, 8
        %s299 = ssub.s32 %s298, 1
        %p300 = scmp.gt.s32.totalorder %s299, 0
        %s301 = scalar_select %p300, %s299, 0
      $region32: #{tpu_custom_call.1} parent=23 // pred_fallthru
        _
      // Predicated region
      $region33: #{tpu_custom_call.1} parent=23 // pred_check
        %p302 = pneg %p137
      $region34: #{tpu_custom_call.1} parent=23 // pred_check_branch
        %304 = sbr.rel (%p302) target = $region36
      $region35: #{tpu_custom_call.1} parent=23 // pred_region
        %s305 = smul.u32 %s19, 8
        %s306 = sadd.s32 %s305, 8
        %p307 = scmp.lt.s32.totalorder %s306, 15
        %s308 = scalar_select %p307, %s306, 15
        %p309 = scmp.lt.s32.totalorder %s18, 1
        %s310 = scalar_select %p309, %s18, 1
        %p311 = scmp.lt.s32.totalorder %s308, 15
        %s312 = scalar_select %p311, %s308, 15
        %p313 = scmp.lt.s32.totalorder %s21, 0
        %s314 = scalar_select %p313, %s21, 0
        %s315 = smul.addr %s312, 3
        %s316 = sadd.s32 %s314, %s315
        %s317 = smul.addr %s310, 48
        %s318 = sadd.s32 %s316, %s317
        %s319 = smul.addr %s318, 4
        %s320 = scalar_lea.vmem %s2, %s319
        %s321 = smul.u32 %s19, 8
        %s322 = sadd.s32 %s321, 8
        %p323 = scmp.lt.s32.totalorder %s322, 15
        %s324 = scalar_select %p323, %s322, 15
      $region36: #{tpu_custom_call.1} parent=23 // pred_fallthru
        _
    $region24: #{tpu_custom_call.1} parent=5 // pred_fallthru
      _
    %p325 = scmp.le.s32.totalorder 1, %s11
    %p326 = scmp.lt.s32.totalorder %s11, 5
    %p327 = pnand %p325, %p326
    %p328 = pneg %p327
    // Predicated region
    $region37: #{tpu_custom_call.1} parent=5 // pred_check
      _
    $region38: #{tpu_custom_call.1} parent=5 // pred_check_branch
      %330 = sbr.rel (%p327) target = $region40
    $region39: #{tpu_custom_call.1} parent=5 // pred_region
      %s331 = ssub.s32 %s11, 1
      %s332 = smul.u32 8, %s23
      %p333 = scmp.lt.s32.totalorder %s22, 1
      %s334 = scalar_select %p333, %s22, 1
      %p335 = scmp.lt.s32.totalorder %s332, 15
      %s336 = scalar_select %p335, %s332, 15
      %p337 = scmp.lt.s32.totalorder %s25, 0
      %s338 = scalar_select %p337, %s25, 0
      %s339 = smul.addr %s336, 3
      %s340 = sadd.s32 %s338, %s339
      %s341 = smul.addr %s334, 48
      %s342 = sadd.s32 %s340, %s341
      %s343 = smul.addr %s342, 4
      %s344 = scalar_lea.vmem %s0, %s343
      %p345 = pneg %p67
      %p346 = pneg %p64
      %s347 = smul.u32 %s23, 8
      %s348 = ssub.s32 %s347, 1
      %p349 = scmp.gt.s32.totalorder %s348, 0
      %s350 = scalar_select %p349, %s348, 0
      %p351 = scmp.lt.s32.totalorder %s22, 1
      %s352 = scalar_select %p351, %s22, 1
      %p353 = scmp.lt.s32.totalorder %s350, 15
      %s354 = scalar_select %p353, %s350, 15
      %p355 = scmp.lt.s32.totalorder %s25, 0
      %s356 = scalar_select %p355, %s25, 0
      %s357 = smul.addr %s354, 3
      %s358 = sadd.s32 %s356, %s357
      %s359 = smul.addr %s352, 48
      %s360 = sadd.s32 %s358, %s359
      %s361 = smul.addr %s360, 4
      %s362 = scalar_lea.vmem %s1, %s361
      %p363 = pneg %p105
      %p364 = pneg %p102
      %s365 = smul.u32 %s23, 8
      %s366 = sadd.s32 %s365, 8
      %p367 = scmp.lt.s32.totalorder %s366, 15
      %s368 = scalar_select %p367, %s366, 15
      %p369 = scmp.lt.s32.totalorder %s22, 1
      %s370 = scalar_select %p369, %s22, 1
      %p371 = scmp.lt.s32.totalorder %s368, 15
      %s372 = scalar_select %p371, %s368, 15
      %p373 = scmp.lt.s32.totalorder %s25, 0
      %s374 = scalar_select %p373, %s25, 0
      %s375 = smul.addr %s372, 3
      %s376 = sadd.s32 %s374, %s375
      %s377 = smul.addr %s370, 48
      %s378 = sadd.s32 %s376, %s377
      %s379 = smul.addr %s378, 4
      %s380 = scalar_lea.vmem %s2, %s379
      %p381 = pneg %p143
      %p382 = pneg %p140
      %p383 = scmp.lt.s32.totalorder %s25, 0
      %s384 = scalar_select %p383, %s25, 0
      %p385 = scmp.lt.s32.totalorder %s24, 0
      %s386 = scalar_select %p385, %s24, 0
      %s387 = sadd.s32 %s386, %s384
      %s388 = smul.addr %s387, 2
      %s389 = scalar_lea.vmem %s3, %s388
      %p390 = pneg %p171
      %p391 = pneg %p168
      %p392 = scmp.lt.s32.totalorder %s24, 0
      %s393 = scalar_select %p392, %s24, 0
      %s394 = scalar_lea.vmem %s4, %s393
      %p395 = pneg %p197
      %p396 = pneg %p194
      %p397 = pneg %p227
      %p398 = pneg %p224
      %s399 = smul.u32 8, %s23
      %p400 = scmp.lt.s32.totalorder %s22, 1
      %s401 = scalar_select %p400, %s22, 1
      %p402 = scmp.lt.s32.totalorder %s399, 15
      %s403 = scalar_select %p402, %s399, 15
      %p404 = scmp.lt.s32.totalorder %s24, 0
      %s405 = scalar_select %p404, %s24, 0
      %s406 = smul.addr %s403, 3
      %s407 = sadd.s32 %s405, %s406
      %s408 = smul.addr %s401, 48
      %s409 = sadd.s32 %s407, %s408
      %s410 = smul.addr %s409, 4
      %s411 = scalar_lea.vmem %s5, %s410
      %s412 = smul.u32 8, %s23
      %p413 = scmp.lt.s32.totalorder %s22, 1
      %s414 = scalar_select %p413, %s22, 1
      %p415 = scmp.lt.s32.totalorder %s412, 15
      %s416 = scalar_select %p415, %s412, 15
      %p417 = scmp.lt.s32.totalorder %s25, 0
      %s418 = scalar_select %p417, %s25, 0
      %s419 = smul.addr %s416, 3
      %s420 = sadd.s32 %s418, %s419
      %s421 = smul.addr %s414, 48
      %s422 = sadd.s32 %s420, %s421
      %s423 = smul.addr %s422, 4
      %s424 = scalar_lea.vmem %s0, %s423
      %s425 = smul.u32 8, %s23
      %s426 = smul.u32 %s23, 8
      %s427 = ssub.s32 %s426, 1
      %p428 = scmp.gt.s32.totalorder %s427, 0
      %s429 = scalar_select %p428, %s427, 0
      %p430 = scmp.lt.s32.totalorder %s22, 1
      %s431 = scalar_select %p430, %s22, 1
      %p432 = scmp.lt.s32.totalorder %s429, 15
      %s433 = scalar_select %p432, %s429, 15
      %p434 = scmp.lt.s32.totalorder %s25, 0
      %s435 = scalar_select %p434, %s25, 0
      %s436 = smul.addr %s433, 3
      %s437 = sadd.s32 %s435, %s436
      %s438 = smul.addr %s431, 48
      %s439 = sadd.s32 %s437, %s438
      %s440 = smul.addr %s439, 4
      %s441 = scalar_lea.vmem %s1, %s440
      %s442 = smul.u32 %s23, 8
      %s443 = ssub.s32 %s442, 1
      %p444 = scmp.gt.s32.totalorder %s443, 0
      %s445 = scalar_select %p444, %s443, 0
      %s446 = smul.u32 %s23, 8
      %s447 = sadd.s32 %s446, 8
      %p448 = scmp.lt.s32.totalorder %s447, 15
      %s449 = scalar_select %p448, %s447, 15
      %p450 = scmp.lt.s32.totalorder %s22, 1
      %s451 = scalar_select %p450, %s22, 1
      %p452 = scmp.lt.s32.totalorder %s449, 15
      %s453 = scalar_select %p452, %s449, 15
      %p454 = scmp.lt.s32.totalorder %s25, 0
      %s455 = scalar_select %p454, %s25, 0
      %s456 = smul.addr %s453, 3
      %s457 = sadd.s32 %s455, %s456
      %s458 = smul.addr %s451, 48
      %s459 = sadd.s32 %s457, %s458
      %s460 = smul.addr %s459, 4
      %s461 = scalar_lea.vmem %s2, %s460
      %s462 = smul.u32 %s23, 8
      %s463 = sadd.s32 %s462, 8
      %p464 = scmp.lt.s32.totalorder %s463, 15
      %s465 = scalar_select %p464, %s463, 15
      %p466 = scmp.lt.s32.totalorder %s25, 0
      %s467 = scalar_select %p466, %s25, 0
      %p468 = scmp.lt.s32.totalorder %s24, 0
      %s469 = scalar_select %p468, %s24, 0
      %s470 = sadd.s32 %s469, %s467
      %s471 = smul.addr %s470, 2
      %s472 = scalar_lea.vmem %s3, %s471
      %p473 = scmp.lt.s32.totalorder %s24, 0
      %s474 = scalar_select %p473, %s24, 0
      %s475 = scalar_lea.vmem %s4, %s474
      %s476 = smul.u32 8, %s23
      %p477 = scmp.lt.s32.totalorder %s22, 1
      %s478 = scalar_select %p477, %s22, 1
      %p479 = scmp.lt.s32.totalorder %s476, 15
      %s480 = scalar_select %p479, %s476, 15
      %p481 = scmp.lt.s32.totalorder %s24, 0
      %s482 = scalar_select %p481, %s24, 0
      %s483 = smul.addr %s480, 3
      %s484 = sadd.s32 %s482, %s483
      %s485 = smul.addr %s478, 48
      %s486 = sadd.s32 %s484, %s485
      %s487 = smul.addr %s486, 4
      %s488 = scalar_lea.vmem %s5, %s487
      %s489 = smul.u32 8, %s23
      %p491 = scmp.eq.s32.totalorder %s25, 0
      // Predicated region
      $region41: #{tpu_custom_call.1} parent=39 // pred_check
        %p492 = pneg %p491
      $region42: #{tpu_custom_call.1} parent=39 // pred_check_branch
        %494 = sbr.rel (%p492) target = $region44
      $region43: #{tpu_custom_call.1} parent=39 // pred_region
        %vm495 = vcmask 523264
        %496 = vst.msk [vmem:[#allocation3] sm:$0xff] %vm495, 0.0
        %497 = vst.msk [vmem:[#allocation3 + $0x8] sm:$0xff] %vm495, 0.0
        %498 = vst.msk [vmem:[#allocation3 + $0x10] sm:$0xff] %vm495, 0.0
        %499 = vst.msk [vmem:[#allocation3 + $0x18] sm:$0xff] %vm495, 0.0
        %500 = vst.msk [vmem:[#allocation3 + $0x20] sm:$0xff] %vm495, 0.0
        %501 = vst.msk [vmem:[#allocation3 + $0x28] sm:$0xff] %vm495, 0.0
        %502 = vst.msk [vmem:[#allocation3 + $0x30] sm:$0xff] %vm495, 0.0
        %503 = vst.msk [vmem:[#allocation3 + $0x38] sm:$0xff] %vm495, 0.0
        %504 = vst.msk [vmem:[#allocation3 + $0x40] sm:$0xff] %vm495, 0.0
        %505 = vst.msk [vmem:[#allocation3 + $0x48] sm:$0xff] %vm495, 0.0
        %506 = vst.msk [vmem:[#allocation3 + $0x50] sm:$0xff] %vm495, 0.0
        %507 = vst.msk [vmem:[#allocation3 + $0x58] sm:$0xff] %vm495, 0.0
        %508 = vst.msk [vmem:[#allocation3 + $0x60] sm:$0xff] %vm495, 0.0
        %509 = vst.msk [vmem:[#allocation3 + $0x68] sm:$0xff] %vm495, 0.0
        %510 = vst.msk [vmem:[#allocation3 + $0x70] sm:$0xff] %vm495, 0.0
        %511 = vst.msk [vmem:[#allocation3 + $0x78] sm:$0xff] %vm495, 0.0
      $region44: #{tpu_custom_call.1} parent=39 // pred_fallthru
        _
      %v512 = vld [vmem:[%s424] sm:$0xf]
      %v513 = vld [vmem:[%s424 + $0x4] sm:$0xf]
      %v514 = vld [vmem:[%s424 + $0x8] sm:$0x1]
      %v515 = vld [vmem:[%s424 + $0xc] sm:$0xf]
      %v516 = vld [vmem:[%s424 + $0x10] sm:$0xf]
      %v517 = vld [vmem:[%s424 + $0x14] sm:$0x1]
      %v518 = vld [vmem:[%s424 + $0x18] sm:$0xf]
      %v519 = vld [vmem:[%s424 + $0x1c] sm:$0xf]
      %v520 = vld [vmem:[%s424 + $0x20] sm:$0x1]
      %v521 = vld [vmem:[%s424 + $0x24] sm:$0xf]
      %v522 = vld [vmem:[%s424 + $0x28] sm:$0xf]
      %v523 = vld [vmem:[%s424 + $0x2c] sm:$0x1]
      %v524 = vld [vmem:[%s424 + $0x30] sm:$0xf]
      %v525 = vld [vmem:[%s424 + $0x34] sm:$0xf]
      %v526 = vld [vmem:[%s424 + $0x38] sm:$0x1]
      %v527 = vld [vmem:[%s424 + $0x3c] sm:$0xf]
      %v528 = vld [vmem:[%s424 + $0x40] sm:$0xf]
      %v529 = vld [vmem:[%s424 + $0x44] sm:$0x1]
      %v530 = vld [vmem:[%s424 + $0x48] sm:$0xf]
      %v531 = vld [vmem:[%s424 + $0x4c] sm:$0xf]
      %v532 = vld [vmem:[%s424 + $0x50] sm:$0x1]
      %v533 = vld [vmem:[%s424 + $0x54] sm:$0xf]
      %v534 = vld [vmem:[%s424 + $0x58] sm:$0xf]
      %v535 = vld [vmem:[%s424 + $0x5c] sm:$0x1]
      %s536 = scalar_lea.vmem [#allocation2], 12
      %vm537 = vcmask 19456
      %538 = vst.msk [vmem:[%s536] sm:$0xf] %vm537, %v512
      %539 = vst.msk [vmem:[%s536 + $0x4] sm:$0xf] %vm537, %v513
      %vm540 = vcmask 16384
      %541 = vst.msk [vmem:[%s536 + $0x8] sm:$0x1] %vm540, %v514
      %542 = vst.msk [vmem:[%s536 + $0xc] sm:$0xf] %vm537, %v515
      %543 = vst.msk [vmem:[%s536 + $0x10] sm:$0xf] %vm537, %v516
      %544 = vst.msk [vmem:[%s536 + $0x14] sm:$0x1] %vm540, %v517
      %545 = vst.msk [vmem:[%s536 + $0x18] sm:$0xf] %vm537, %v518
      %546 = vst.msk [vmem:[%s536 + $0x1c] sm:$0xf] %vm537, %v519
      %547 = vst.msk [vmem:[%s536 + $0x20] sm:$0x1] %vm540, %v520
      %548 = vst.msk [vmem:[%s536 + $0x24] sm:$0xf] %vm537, %v521
      %549 = vst.msk [vmem:[%s536 + $0x28] sm:$0xf] %vm537, %v522
      %550 = vst.msk [vmem:[%s536 + $0x2c] sm:$0x1] %vm540, %v523
      %551 = vst.msk [vmem:[%s536 + $0x30] sm:$0xf] %vm537, %v524
      %552 = vst.msk [vmem:[%s536 + $0x34] sm:$0xf] %vm537, %v525
      %553 = vst.msk [vmem:[%s536 + $0x38] sm:$0x1] %vm540, %v526
      %554 = vst.msk [vmem:[%s536 + $0x3c] sm:$0xf] %vm537, %v527
      %555 = vst.msk [vmem:[%s536 + $0x40] sm:$0xf] %vm537, %v528
      %556 = vst.msk [vmem:[%s536 + $0x44] sm:$0x1] %vm540, %v529
      %557 = vst.msk [vmem:[%s536 + $0x48] sm:$0xf] %vm537, %v530
      %558 = vst.msk [vmem:[%s536 + $0x4c] sm:$0xf] %vm537, %v531
      %559 = vst.msk [vmem:[%s536 + $0x50] sm:$0x1] %vm540, %v532
      %560 = vst.msk [vmem:[%s536 + $0x54] sm:$0xf] %vm537, %v533
      %561 = vst.msk [vmem:[%s536 + $0x58] sm:$0xf] %vm537, %v534
      %562 = vst.msk [vmem:[%s536 + $0x5c] sm:$0x1] %vm540, %v535
      %p563 = scmp.eq.s32.totalorder %s23, 0
      // Predicated region
      $region45: #{tpu_custom_call.1} parent=39 // pred_check
        %p564 = pneg %p563
      $region46: #{tpu_custom_call.1} parent=39 // pred_check_branch
        %566 = sbr.rel (%p564) target = $region48
      $region47: #{tpu_custom_call.1} parent=39 // pred_region
        %567 = vst.msk [vmem:[#allocation2] sm:$0xf] %vm537, 0
        %568 = vst.msk [vmem:[#allocation2 + $0x4] sm:$0xf] %vm537, 0
        %569 = vst.msk [vmem:[#allocation2 + $0x8] sm:$0x1] %vm540, 0
      $region48: #{tpu_custom_call.1} parent=39 // pred_fallthru
        _
      %p570 = scmp.gt.s32.totalorder %s23, 0
      // Predicated region
      $region49: #{tpu_custom_call.1} parent=39 // pred_check
        %p571 = pneg %p570
      $region50: #{tpu_custom_call.1} parent=39 // pred_check_branch
        %573 = sbr.rel (%p571) target = $region52
      $region51: #{tpu_custom_call.1} parent=39 // pred_region
        %v574 = vld [vmem:[%s441] sm:$0xf]
        %v575 = vld [vmem:[%s441 + $0x4] sm:$0xf]
        %v576 = vld [vmem:[%s441 + $0x8] sm:$0x1]
        %577 = vst.msk [vmem:[#allocation2] sm:$0xf] %vm537, %v574
        %578 = vst.msk [vmem:[#allocation2 + $0x4] sm:$0xf] %vm537, %v575
        %579 = vst.msk [vmem:[#allocation2 + $0x8] sm:$0x1] %vm540, %v576
      $region52: #{tpu_custom_call.1} parent=39 // pred_fallthru
        _
      %p580 = scmp.eq.s32.totalorder %s23, 1
      // Predicated region
      $region53: #{tpu_custom_call.1} parent=39 // pred_check
        %p581 = pneg %p580
      $region54: #{tpu_custom_call.1} parent=39 // pred_check_branch
        %583 = sbr.rel (%p581) target = $region56
      $region55: #{tpu_custom_call.1} parent=39 // pred_region
        %s584 = scalar_lea.vmem [#allocation2], 108
        %585 = vst.msk [vmem:[%s584] sm:$0xf] %vm537, 0
        %586 = vst.msk [vmem:[%s584 + $0x4] sm:$0xf] %vm537, 0
        %587 = vst.msk [vmem:[%s584 + $0x8] sm:$0x1] %vm540, 0
      $region56: #{tpu_custom_call.1} parent=39 // pred_fallthru
        _
      %p588 = scmp.lt.s32.totalorder %s23, 1
      // Predicated region
      $region57: #{tpu_custom_call.1} parent=39 // pred_check
        %p589 = pneg %p588
      $region58: #{tpu_custom_call.1} parent=39 // pred_check_branch
        %591 = sbr.rel (%p589) target = $region60
      $region59: #{tpu_custom_call.1} parent=39 // pred_region
        %v592 = vld [vmem:[%s461] sm:$0xf]
        %v593 = vld [vmem:[%s461 + $0x4] sm:$0xf]
        %v594 = vld [vmem:[%s461 + $0x8] sm:$0x1]
        %s595 = scalar_lea.vmem [#allocation2], 108
        %596 = vst.msk [vmem:[%s595] sm:$0xf] %vm537, %v592
        %597 = vst.msk [vmem:[%s595 + $0x4] sm:$0xf] %vm537, %v593
        %598 = vst.msk [vmem:[%s595 + $0x8] sm:$0x1] %vm540, %v594
      $region60: #{tpu_custom_call.1} parent=39 // pred_fallthru
        _
      %v599 = vld [vmem:[#allocation3] sm:$0xff]
      %v600 = vld [vmem:[#allocation3 + $0x8] sm:$0xff]
      %v601 = vld [vmem:[#allocation3 + $0x10] sm:$0xff]
      %v602 = vld [vmem:[#allocation3 + $0x18] sm:$0xff]
      %v603 = vld [vmem:[#allocation3 + $0x20] sm:$0xff]
      %v604 = vld [vmem:[#allocation3 + $0x28] sm:$0xff]
      %v605 = vld [vmem:[#allocation3 + $0x30] sm:$0xff]
      %v606 = vld [vmem:[#allocation3 + $0x38] sm:$0xff]
      %v607 = vld [vmem:[#allocation3 + $0x40] sm:$0xff]
      %v608 = vld [vmem:[#allocation3 + $0x48] sm:$0xff]
      %v609 = vld [vmem:[#allocation3 + $0x50] sm:$0xff]
      %v610 = vld [vmem:[#allocation3 + $0x58] sm:$0xff]
      %v611 = vld [vmem:[#allocation3 + $0x60] sm:$0xff]
      %v612 = vld [vmem:[#allocation3 + $0x68] sm:$0xff]
      %v613 = vld [vmem:[#allocation3 + $0x70] sm:$0xff]
      %v614 = vld [vmem:[#allocation3 + $0x78] sm:$0xff]
      %v615 = vld [vmem:[#allocation2] sm:$0xf]
      %v616 = vld [vmem:[#allocation2 + $0x4] sm:$0xf]
      %v617 = vld [vmem:[#allocation2 + $0x8] sm:$0x1]
      %v618 = vld [vmem:[#allocation2 + $0xc] sm:$0xf]
      %v619 = vld [vmem:[#allocation2 + $0x10] sm:$0xf]
      %v620 = vld [vmem:[#allocation2 + $0x14] sm:$0x1]
      %v621 = vld [vmem:[#allocation2 + $0x18] sm:$0xf]
      %v622 = vld [vmem:[#allocation2 + $0x1c] sm:$0xf]
      %v623 = vld [vmem:[#allocation2 + $0x20] sm:$0x1]
      %v624 = vld [vmem:[#allocation2 + $0x24] sm:$0xf]
      %v625 = vld [vmem:[#allocation2 + $0x28] sm:$0xf]
      %v626 = vld [vmem:[#allocation2 + $0x2c] sm:$0x1]
      %v627 = vld [vmem:[#allocation2 + $0x30] sm:$0xf]
      %v628 = vld [vmem:[#allocation2 + $0x34] sm:$0xf]
      %v629 = vld [vmem:[#allocation2 + $0x38] sm:$0x1]
      %v630 = vld [vmem:[#allocation2 + $0x3c] sm:$0xf]
      %v631 = vld [vmem:[#allocation2 + $0x40] sm:$0xf]
      %v632 = vld [vmem:[#allocation2 + $0x44] sm:$0x1]
      %v633 = vld [vmem:[#allocation2 + $0x48] sm:$0xf]
      %v634 = vld [vmem:[#allocation2 + $0x4c] sm:$0xf]
      %v635 = vld [vmem:[#allocation2 + $0x50] sm:$0x1]
      %v636 = vld [vmem:[#allocation2 + $0x54] sm:$0xf]
      %v637 = vld [vmem:[#allocation2 + $0x58] sm:$0xf]
      %v638 = vld [vmem:[#allocation2 + $0x5c] sm:$0x1]
      %v639 = vld [vmem:[%s472] sm:$0x3]
      %v656 = vunpack.c.l.b16 %v615
      %v657 = vunpack.c.l.b16 %v616
      %v658 = vunpack.c.l.b16 %v618
      %v659 = vunpack.c.l.b16 %v619
      %v660 = vunpack.c.l.b16 %v621
      %v661 = vunpack.c.l.b16 %v622
      %v662 = vunpack.c.l.b16 %v624
      %v663 = vunpack.c.l.b16 %v625
      %v664 = vunpack.c.l.b16 %v627
      %v665 = vunpack.c.l.b16 %v628
      %v666 = vunpack.c.l.b16 %v630
      %v667 = vunpack.c.l.b16 %v631
      %v668 = vunpack.c.l.b16 %v633
      %v669 = vunpack.c.l.b16 %v634
      %v670 = vunpack.c.l.b16 %v636
      %v671 = vunpack.c.l.b16 %v637
      %v672 = vpack.c.b16 %v657, %v656
      %v673 = vpack.c.b16 %v659, %v658
      %v674 = vpack.c.b16 %v661, %v660
      %v675 = vpack.c.b16 %v663, %v662
      %v676 = vpack.c.b16 %v665, %v664
      %v677 = vpack.c.b16 %v667, %v666
      %v678 = vpack.c.b16 %v669, %v668
      %v679 = vpack.c.b16 %v671, %v670
      %vm680 = vcmask 23552
      %v682 = vsel %vm680, %v672, 0
      %v685 = vsel %vm680, %v673, 0
      %v688 = vsel %vm680, %v674, 0
      %v691 = vsel %vm680, %v675, 0
      %v694 = vsel %vm680, %v676, 0
      %v697 = vsel %vm680, %v677, 0
      %v700 = vsel %vm680, %v678, 0
      %v703 = vsel %vm680, %v679, 0
      %vm705 = vcmask 1040384
      %vm706 = vcmask 1041408
      %v707 = vsel %vm705, 4294967295, 65535
      %v708 = vsel %vm706, %v707, 0
      %v710 = vand.u32 %v639, %v708
      %712 = vmatpush.bf16.msra.mxu0 0
      %713 = vmatpush.bf16.msra.mxu0 0
      %714 = vmatpush.bf16.msra.mxu0 0
      %715 = vmatpush.bf16.msra.mxu0 0
      %716 = vmatpush.bf16.msra.mxu0 0
      %717 = vmatpush.bf16.msra.mxu0 0
      %718 = vmatpush.bf16.msra.mxu0 0
      %719 = vmatpush.bf16.msra.mxu0 %v710
      %720 = vmatmul.bf16.gmra.mxu0 %v682
      %v721 = vpop.f32.mrf.mxu0
      %v722 = vadd.f32 0.0, %v721
      %v723 = vpop.f32.mrf.mxu0
      %v724 = vadd.f32 0.0, %v723
      %725 = vmatmul.bf16.gmra.mxu0 %v685
      %v726 = vpop.f32.mrf.mxu0
      %v727 = vadd.f32 0.0, %v726
      %v728 = vpop.f32.mrf.mxu0
      %v729 = vadd.f32 0.0, %v728
      %730 = vmatmul.bf16.gmra.mxu0 %v688
      %v731 = vpop.f32.mrf.mxu0
      %v732 = vadd.f32 0.0, %v731
      %v733 = vpop.f32.mrf.mxu0
      %v734 = vadd.f32 0.0, %v733
      %735 = vmatmul.bf16.gmra.mxu0 %v691
      %v736 = vpop.f32.mrf.mxu0
      %v737 = vadd.f32 0.0, %v736
      %v738 = vpop.f32.mrf.mxu0
      %v739 = vadd.f32 0.0, %v738
      %740 = vmatmul.bf16.gmra.mxu0 %v694
      %v741 = vpop.f32.mrf.mxu0
      %v742 = vadd.f32 0.0, %v741
      %v743 = vpop.f32.mrf.mxu0
      %v744 = vadd.f32 0.0, %v743
      %745 = vmatmul.bf16.gmra.mxu0 %v697
      %v746 = vpop.f32.mrf.mxu0
      %v747 = vadd.f32 0.0, %v746
      %v748 = vpop.f32.mrf.mxu0
      %v749 = vadd.f32 0.0, %v748
      %750 = vmatmul.bf16.gmra.mxu0 %v700
      %v751 = vpop.f32.mrf.mxu0
      %v752 = vadd.f32 0.0, %v751
      %v753 = vpop.f32.mrf.mxu0
      %v754 = vadd.f32 0.0, %v753
      %755 = vmatmul.bf16.gmra.mxu0 %v703
      %v756 = vpop.f32.mrf.mxu0
      %v757 = vadd.f32 0.0, %v756
      %v758 = vpop.f32.mrf.mxu0
      %v759 = vadd.f32 0.0, %v758
      %760 = vdwg.mxu0
      %v761 = vadd.f32 %v599, %v722
      %v762 = vadd.f32 %v600, %v724
      %v763 = vadd.f32 %v601, %v727
      %v764 = vadd.f32 %v602, %v729
      %v765 = vadd.f32 %v603, %v732
      %v766 = vadd.f32 %v604, %v734
      %v767 = vadd.f32 %v605, %v737
      %v768 = vadd.f32 %v606, %v739
      %v769 = vadd.f32 %v607, %v742
      %v770 = vadd.f32 %v608, %v744
      %v771 = vadd.f32 %v609, %v747
      %v772 = vadd.f32 %v610, %v749
      %v773 = vadd.f32 %v611, %v752
      %v774 = vadd.f32 %v612, %v754
      %v775 = vadd.f32 %v613, %v757
      %v776 = vadd.f32 %v614, %v759
      %vm777 = vsmask.f32 3328
      %vm778 = vsmask.f32 7440
      %vm779 = vmor %vm777, %vm778
      %v781 = vshrl.u32 %v615, 16
      %v783 = vrot.slane %v781, 4
      %v784 = vshll.u32 %v615, 16
      %v786 = vrot.slane %v784, 5
      %v787 = vor.u32 %v783, %v786
      %v788 = vrot.slane %v787, 4
      %v790 = vshll.u32 %v616, 16
      %v792 = vrot.slane %v790, 5
      %v793 = vsel %vm779, %v788, %v792
      %v794 = vshrl.u32 %v616, 16
      %v796 = vrot.slane %v794, 4
      %v797 = vor.u32 %v796, %v792
      %v798 = vrot.slane %v797, 4
      %v800 = vshll.u32 %v617, 16
      %v802 = vrot.slane %v800, 5
      %v803 = vsel %vm779, %v798, %v802
      %v805 = vshrl.u32 %v618, 16
      %v807 = vrot.slane %v805, 4
      %v808 = vshll.u32 %v618, 16
      %v810 = vrot.slane %v808, 5
      %v811 = vor.u32 %v807, %v810
      %v812 = vrot.slane %v811, 4
      %v814 = vshll.u32 %v619, 16
      %v816 = vrot.slane %v814, 5
      %v817 = vsel %vm779, %v812, %v816
      %v818 = vshrl.u32 %v619, 16
      %v820 = vrot.slane %v818, 4
      %v821 = vor.u32 %v820, %v816
      %v822 = vrot.slane %v821, 4
      %v824 = vshll.u32 %v620, 16
      %v826 = vrot.slane %v824, 5
      %v827 = vsel %vm779, %v822, %v826
      %v829 = vshrl.u32 %v621, 16
      %v831 = vrot.slane %v829, 4
      %v832 = vshll.u32 %v621, 16
      %v834 = vrot.slane %v832, 5
      %v835 = vor.u32 %v831, %v834
      %v836 = vrot.slane %v835, 4
      %v838 = vshll.u32 %v622, 16
      %v840 = vrot.slane %v838, 5
      %v841 = vsel %vm779, %v836, %v840
      %v842 = vshrl.u32 %v622, 16
      %v844 = vrot.slane %v842, 4
      %v845 = vor.u32 %v844, %v840
      %v846 = vrot.slane %v845, 4
      %v848 = vshll.u32 %v623, 16
      %v850 = vrot.slane %v848, 5
      %v851 = vsel %vm779, %v846, %v850
      %v853 = vshrl.u32 %v624, 16
      %v855 = vrot.slane %v853, 4
      %v856 = vshll.u32 %v624, 16
      %v858 = vrot.slane %v856, 5
      %v859 = vor.u32 %v855, %v858
      %v860 = vrot.slane %v859, 4
      %v862 = vshll.u32 %v625, 16
      %v864 = vrot.slane %v862, 5
      %v865 = vsel %vm779, %v860, %v864
      %v866 = vshrl.u32 %v625, 16
      %v868 = vrot.slane %v866, 4
      %v869 = vor.u32 %v868, %v864
      %v870 = vrot.slane %v869, 4
      %v872 = vshll.u32 %v626, 16
      %v874 = vrot.slane %v872, 5
      %v875 = vsel %vm779, %v870, %v874
      %v877 = vshrl.u32 %v627, 16
      %v879 = vrot.slane %v877, 4
      %v880 = vshll.u32 %v627, 16
      %v882 = vrot.slane %v880, 5
      %v883 = vor.u32 %v879, %v882
      %v884 = vrot.slane %v883, 4
      %v886 = vshll.u32 %v628, 16
      %v888 = vrot.slane %v886, 5
      %v889 = vsel %vm779, %v884, %v888
      %v890 = vshrl.u32 %v628, 16
      %v892 = vrot.slane %v890, 4
      %v893 = vor.u32 %v892, %v888
      %v894 = vrot.slane %v893, 4
      %v896 = vshll.u32 %v629, 16
      %v898 = vrot.slane %v896, 5
      %v899 = vsel %vm779, %v894, %v898
      %v901 = vshrl.u32 %v630, 16
      %v903 = vrot.slane %v901, 4
      %v904 = vshll.u32 %v630, 16
      %v906 = vrot.slane %v904, 5
      %v907 = vor.u32 %v903, %v906
      %v908 = vrot.slane %v907, 4
      %v910 = vshll.u32 %v631, 16
      %v912 = vrot.slane %v910, 5
      %v913 = vsel %vm779, %v908, %v912
      %v914 = vshrl.u32 %v631, 16
      %v916 = vrot.slane %v914, 4
      %v917 = vor.u32 %v916, %v912
      %v918 = vrot.slane %v917, 4
      %v920 = vshll.u32 %v632, 16
      %v922 = vrot.slane %v920, 5
      %v923 = vsel %vm779, %v918, %v922
      %v925 = vshrl.u32 %v633, 16
      %v927 = vrot.slane %v925, 4
      %v928 = vshll.u32 %v633, 16
      %v930 = vrot.slane %v928, 5
      %v931 = vor.u32 %v927, %v930
      %v932 = vrot.slane %v931, 4
      %v934 = vshll.u32 %v634, 16
      %v936 = vrot.slane %v934, 5
      %v937 = vsel %vm779, %v932, %v936
      %v938 = vshrl.u32 %v634, 16
      %v940 = vrot.slane %v938, 4
      %v941 = vor.u32 %v940, %v936
      %v942 = vrot.slane %v941, 4
      %v944 = vshll.u32 %v635, 16
      %v946 = vrot.slane %v944, 5
      %v947 = vsel %vm779, %v942, %v946
      %v949 = vshrl.u32 %v636, 16
      %v951 = vrot.slane %v949, 4
      %v952 = vshll.u32 %v636, 16
      %v954 = vrot.slane %v952, 5
      %v955 = vor.u32 %v951, %v954
      %v956 = vrot.slane %v955, 4
      %v958 = vshll.u32 %v637, 16
      %v960 = vrot.slane %v958, 5
      %v961 = vsel %vm779, %v956, %v960
      %v962 = vshrl.u32 %v637, 16
      %v964 = vrot.slane %v962, 4
      %v965 = vor.u32 %v964, %v960
      %v966 = vrot.slane %v965, 4
      %v968 = vshll.u32 %v638, 16
      %v970 = vrot.slane %v968, 5
      %v971 = vsel %vm779, %v966, %v970
      %s972 = scalar_lea.vmem %s472, 2
      %v973 = vld [vmem:[%s972] sm:$0x3]
      %v974 = vunpack.c.l.b16 %v793
      %v975 = vunpack.c.l.b16 %v803
      %v976 = vunpack.c.l.b16 %v817
      %v977 = vunpack.c.l.b16 %v827
      %v978 = vunpack.c.l.b16 %v841
      %v979 = vunpack.c.l.b16 %v851
      %v980 = vunpack.c.l.b16 %v865
      %v981 = vunpack.c.l.b16 %v875
      %v982 = vunpack.c.l.b16 %v889
      %v983 = vunpack.c.l.b16 %v899
      %v984 = vunpack.c.l.b16 %v913
      %v985 = vunpack.c.l.b16 %v923
      %v986 = vunpack.c.l.b16 %v937
      %v987 = vunpack.c.l.b16 %v947
      %v988 = vunpack.c.l.b16 %v961
      %v989 = vunpack.c.l.b16 %v971
      %v990 = vpack.c.b16 %v975, %v974
      %v991 = vpack.c.b16 %v977, %v976
      %v992 = vpack.c.b16 %v979, %v978
      %v993 = vpack.c.b16 %v981, %v980
      %v994 = vpack.c.b16 %v983, %v982
      %v995 = vpack.c.b16 %v985, %v984
      %v996 = vpack.c.b16 %v987, %v986
      %v997 = vpack.c.b16 %v989, %v988
      %v999 = vsel %vm680, %v990, 0
      %v1002 = vsel %vm680, %v991, 0
      %v1005 = vsel %vm680, %v992, 0
      %v1008 = vsel %vm680, %v993, 0
      %v1011 = vsel %vm680, %v994, 0
      %v1014 = vsel %vm680, %v995, 0
      %v1017 = vsel %vm680, %v996, 0
      %v1020 = vsel %vm680, %v997, 0
      %v1023 = vand.u32 %v973, %v708
      %1025 = vmatpush.bf16.msra.mxu0 0
      %1026 = vmatpush.bf16.msra.mxu0 0
      %1027 = vmatpush.bf16.msra.mxu0 0
      %1028 = vmatpush.bf16.msra.mxu0 0
      %1029 = vmatpush.bf16.msra.mxu0 0
      %1030 = vmatpush.bf16.msra.mxu0 0
      %1031 = vmatpush.bf16.msra.mxu0 0
      %1032 = vmatpush.bf16.msra.mxu0 %v1023
      %1033 = vmatmul.bf16.gmra.mxu0 %v999
      %v1034 = vpop.f32.mrf.mxu0
      %v1035 = vadd.f32 0.0, %v1034
      %v1036 = vpop.f32.mrf.mxu0
      %v1037 = vadd.f32 0.0, %v1036
      %1038 = vmatmul.bf16.gmra.mxu0 %v1002
      %v1039 = vpop.f32.mrf.mxu0
      %v1040 = vadd.f32 0.0, %v1039
      %v1041 = vpop.f32.mrf.mxu0
      %v1042 = vadd.f32 0.0, %v1041
      %1043 = vmatmul.bf16.gmra.mxu0 %v1005
      %v1044 = vpop.f32.mrf.mxu0
      %v1045 = vadd.f32 0.0, %v1044
      %v1046 = vpop.f32.mrf.mxu0
      %v1047 = vadd.f32 0.0, %v1046
      %1048 = vmatmul.bf16.gmra.mxu0 %v1008
      %v1049 = vpop.f32.mrf.mxu0
      %v1050 = vadd.f32 0.0, %v1049
      %v1051 = vpop.f32.mrf.mxu0
      %v1052 = vadd.f32 0.0, %v1051
      %1053 = vmatmul.bf16.gmra.mxu0 %v1011
      %v1054 = vpop.f32.mrf.mxu0
      %v1055 = vadd.f32 0.0, %v1054
      %v1056 = vpop.f32.mrf.mxu0
      %v1057 = vadd.f32 0.0, %v1056
      %1058 = vmatmul.bf16.gmra.mxu0 %v1014
      %v1059 = vpop.f32.mrf.mxu0
      %v1060 = vadd.f32 0.0, %v1059
      %v1061 = vpop.f32.mrf.mxu0
      %v1062 = vadd.f32 0.0, %v1061
      %1063 = vmatmul.bf16.gmra.mxu0 %v1017
      %v1064 = vpop.f32.mrf.mxu0
      %v1065 = vadd.f32 0.0, %v1064
      %v1066 = vpop.f32.mrf.mxu0
      %v1067 = vadd.f32 0.0, %v1066
      %1068 = vmatmul.bf16.gmra.mxu0 %v1020
      %v1069 = vpop.f32.mrf.mxu0
      %v1070 = vadd.f32 0.0, %v1069
      %v1071 = vpop.f32.mrf.mxu0
      %v1072 = vadd.f32 0.0, %v1071
      %1073 = vdwg.mxu0
      %v1074 = vadd.f32 %v761, %v1035
      %v1075 = vadd.f32 %v762, %v1037
      %v1076 = vadd.f32 %v763, %v1040
      %v1077 = vadd.f32 %v764, %v1042
      %v1078 = vadd.f32 %v765, %v1045
      %v1079 = vadd.f32 %v766, %v1047
      %v1080 = vadd.f32 %v767, %v1050
      %v1081 = vadd.f32 %v768, %v1052
      %v1082 = vadd.f32 %v769, %v1055
      %v1083 = vadd.f32 %v770, %v1057
      %v1084 = vadd.f32 %v771, %v1060
      %v1085 = vadd.f32 %v772, %v1062
      %v1086 = vadd.f32 %v773, %v1065
      %v1087 = vadd.f32 %v774, %v1067
      %v1088 = vadd.f32 %v775, %v1070
      %v1089 = vadd.f32 %v776, %v1072
      %vm1098 = vcmask 1042432
      %vm1099 = vcmask 1046532
      %vm1100 = vmor %vm1098, %vm1099
      %v1101 = vrot.slane %v615, 5
      %v1102 = vrot.slane %v1101, 4
      %v1103 = vrot.slane %v616, 5
      %v1104 = vsel %vm1100, %v1102, %v1103
      %v1105 = vrot.slane %v1103, 4
      %v1106 = vrot.slane %v617, 5
      %v1107 = vsel %vm1100, %v1105, %v1106
      %v1108 = vrot.slane %v618, 5
      %v1109 = vrot.slane %v1108, 4
      %v1110 = vrot.slane %v619, 5
      %v1111 = vsel %vm1100, %v1109, %v1110
      %v1112 = vrot.slane %v1110, 4
      %v1113 = vrot.slane %v620, 5
      %v1114 = vsel %vm1100, %v1112, %v1113
      %v1115 = vrot.slane %v621, 5
      %v1116 = vrot.slane %v1115, 4
      %v1117 = vrot.slane %v622, 5
      %v1118 = vsel %vm1100, %v1116, %v1117
      %v1119 = vrot.slane %v1117, 4
      %v1120 = vrot.slane %v623, 5
      %v1121 = vsel %vm1100, %v1119, %v1120
      %v1122 = vrot.slane %v624, 5
      %v1123 = vrot.slane %v1122, 4
      %v1124 = vrot.slane %v625, 5
      %v1125 = vsel %vm1100, %v1123, %v1124
      %v1126 = vrot.slane %v1124, 4
      %v1127 = vrot.slane %v626, 5
      %v1128 = vsel %vm1100, %v1126, %v1127
      %v1129 = vrot.slane %v627, 5
      %v1130 = vrot.slane %v1129, 4
      %v1131 = vrot.slane %v628, 5
      %v1132 = vsel %vm1100, %v1130, %v1131
      %v1133 = vrot.slane %v1131, 4
      %v1134 = vrot.slane %v629, 5
      %v1135 = vsel %vm1100, %v1133, %v1134
      %v1136 = vrot.slane %v630, 5
      %v1137 = vrot.slane %v1136, 4
      %v1138 = vrot.slane %v631, 5
      %v1139 = vsel %vm1100, %v1137, %v1138
      %v1140 = vrot.slane %v1138, 4
      %v1141 = vrot.slane %v632, 5
      %v1142 = vsel %vm1100, %v1140, %v1141
      %v1143 = vrot.slane %v633, 5
      %v1144 = vrot.slane %v1143, 4
      %v1145 = vrot.slane %v634, 5
      %v1146 = vsel %vm1100, %v1144, %v1145
      %v1147 = vrot.slane %v1145, 4
      %v1148 = vrot.slane %v635, 5
      %v1149 = vsel %vm1100, %v1147, %v1148
      %v1150 = vrot.slane %v636, 5
      %v1151 = vrot.slane %v1150, 4
      %v1152 = vrot.slane %v637, 5
      %v1153 = vsel %vm1100, %v1151, %v1152
      %v1154 = vrot.slane %v1152, 4
      %v1155 = vrot.slane %v638, 5
      %v1156 = vsel %vm1100, %v1154, %v1155
      %s1157 = scalar_lea.vmem %s472, 4
      %v1158 = vld [vmem:[%s1157] sm:$0x3]
      %v1159 = vunpack.c.l.b16 %v1104
      %v1160 = vunpack.c.l.b16 %v1107
      %v1161 = vunpack.c.l.b16 %v1111
      %v1162 = vunpack.c.l.b16 %v1114
      %v1163 = vunpack.c.l.b16 %v1118
      %v1164 = vunpack.c.l.b16 %v1121
      %v1165 = vunpack.c.l.b16 %v1125
      %v1166 = vunpack.c.l.b16 %v1128
      %v1167 = vunpack.c.l.b16 %v1132
      %v1168 = vunpack.c.l.b16 %v1135
      %v1169 = vunpack.c.l.b16 %v1139
      %v1170 = vunpack.c.l.b16 %v1142
      %v1171 = vunpack.c.l.b16 %v1146
      %v1172 = vunpack.c.l.b16 %v1149
      %v1173 = vunpack.c.l.b16 %v1153
      %v1174 = vunpack.c.l.b16 %v1156
      %v1175 = vpack.c.b16 %v1160, %v1159
      %v1176 = vpack.c.b16 %v1162, %v1161
      %v1177 = vpack.c.b16 %v1164, %v1163
      %v1178 = vpack.c.b16 %v1166, %v1165
      %v1179 = vpack.c.b16 %v1168, %v1167
      %v1180 = vpack.c.b16 %v1170, %v1169
      %v1181 = vpack.c.b16 %v1172, %v1171
      %v1182 = vpack.c.b16 %v1174, %v1173
      %v1184 = vsel %vm680, %v1175, 0
      %v1187 = vsel %vm680, %v1176, 0
      %v1190 = vsel %vm680, %v1177, 0
      %v1193 = vsel %vm680, %v1178, 0
      %v1196 = vsel %vm680, %v1179, 0
      %v1199 = vsel %vm680, %v1180, 0
      %v1202 = vsel %vm680, %v1181, 0
      %v1205 = vsel %vm680, %v1182, 0
      %v1208 = vand.u32 %v1158, %v708
      %1210 = vmatpush.bf16.msra.mxu0 0
      %1211 = vmatpush.bf16.msra.mxu0 0
      %1212 = vmatpush.bf16.msra.mxu0 0
      %1213 = vmatpush.bf16.msra.mxu0 0
      %1214 = vmatpush.bf16.msra.mxu0 0
      %1215 = vmatpush.bf16.msra.mxu0 0
      %1216 = vmatpush.bf16.msra.mxu0 0
      %1217 = vmatpush.bf16.msra.mxu0 %v1208
      %1218 = vmatmul.bf16.gmra.mxu0 %v1184
      %v1219 = vpop.f32.mrf.mxu0
      %v1220 = vadd.f32 0.0, %v1219
      %v1221 = vpop.f32.mrf.mxu0
      %v1222 = vadd.f32 0.0, %v1221
      %1223 = vmatmul.bf16.gmra.mxu0 %v1187
      %v1224 = vpop.f32.mrf.mxu0
      %v1225 = vadd.f32 0.0, %v1224
      %v1226 = vpop.f32.mrf.mxu0
      %v1227 = vadd.f32 0.0, %v1226
      %1228 = vmatmul.bf16.gmra.mxu0 %v1190
      %v1229 = vpop.f32.mrf.mxu0
      %v1230 = vadd.f32 0.0, %v1229
      %v1231 = vpop.f32.mrf.mxu0
      %v1232 = vadd.f32 0.0, %v1231
      %1233 = vmatmul.bf16.gmra.mxu0 %v1193
      %v1234 = vpop.f32.mrf.mxu0
      %v1235 = vadd.f32 0.0, %v1234
      %v1236 = vpop.f32.mrf.mxu0
      %v1237 = vadd.f32 0.0, %v1236
      %1238 = vmatmul.bf16.gmra.mxu0 %v1196
      %v1239 = vpop.f32.mrf.mxu0
      %v1240 = vadd.f32 0.0, %v1239
      %v1241 = vpop.f32.mrf.mxu0
      %v1242 = vadd.f32 0.0, %v1241
      %1243 = vmatmul.bf16.gmra.mxu0 %v1199
      %v1244 = vpop.f32.mrf.mxu0
      %v1245 = vadd.f32 0.0, %v1244
      %v1246 = vpop.f32.mrf.mxu0
      %v1247 = vadd.f32 0.0, %v1246
      %1248 = vmatmul.bf16.gmra.mxu0 %v1202
      %v1249 = vpop.f32.mrf.mxu0
      %v1250 = vadd.f32 0.0, %v1249
      %v1251 = vpop.f32.mrf.mxu0
      %v1252 = vadd.f32 0.0, %v1251
      %1253 = vmatmul.bf16.gmra.mxu0 %v1205
      %v1254 = vpop.f32.mrf.mxu0
      %v1255 = vadd.f32 0.0, %v1254
      %v1256 = vpop.f32.mrf.mxu0
      %v1257 = vadd.f32 0.0, %v1256
      %1258 = vdwg.mxu0
      %v1259 = vadd.f32 %v1074, %v1220
      %v1260 = vadd.f32 %v1075, %v1222
      %v1261 = vadd.f32 %v1076, %v1225
      %v1262 = vadd.f32 %v1077, %v1227
      %v1263 = vadd.f32 %v1078, %v1230
      %v1264 = vadd.f32 %v1079, %v1232
      %v1265 = vadd.f32 %v1080, %v1235
      %v1266 = vadd.f32 %v1081, %v1237
      %v1267 = vadd.f32 %v1082, %v1240
      %v1268 = vadd.f32 %v1083, %v1242
      %v1269 = vadd.f32 %v1084, %v1245
      %v1270 = vadd.f32 %v1085, %v1247
      %v1271 = vadd.f32 %v1086, %v1250
      %v1272 = vadd.f32 %v1087, %v1252
      %v1273 = vadd.f32 %v1088, %v1255
      %v1274 = vadd.f32 %v1089, %v1257
      %v1275 = vld [vmem:[%s536] sm:$0xf]
      %v1276 = vld [vmem:[%s536 + $0x4] sm:$0xf]
      %v1277 = vld [vmem:[%s536 + $0x8] sm:$0x1]
      %v1278 = vld [vmem:[%s536 + $0xc] sm:$0xf]
      %v1279 = vld [vmem:[%s536 + $0x10] sm:$0xf]
      %v1280 = vld [vmem:[%s536 + $0x14] sm:$0x1]
      %v1281 = vld [vmem:[%s536 + $0x18] sm:$0xf]
      %v1282 = vld [vmem:[%s536 + $0x1c] sm:$0xf]
      %v1283 = vld [vmem:[%s536 + $0x20] sm:$0x1]
      %v1284 = vld [vmem:[%s536 + $0x24] sm:$0xf]
      %v1285 = vld [vmem:[%s536 + $0x28] sm:$0xf]
      %v1286 = vld [vmem:[%s536 + $0x2c] sm:$0x1]
      %v1287 = vld [vmem:[%s536 + $0x30] sm:$0xf]
      %v1288 = vld [vmem:[%s536 + $0x34] sm:$0xf]
      %v1289 = vld [vmem:[%s536 + $0x38] sm:$0x1]
      %v1290 = vld [vmem:[%s536 + $0x3c] sm:$0xf]
      %v1291 = vld [vmem:[%s536 + $0x40] sm:$0xf]
      %v1292 = vld [vmem:[%s536 + $0x44] sm:$0x1]
      %v1293 = vld [vmem:[%s536 + $0x48] sm:$0xf]
      %v1294 = vld [vmem:[%s536 + $0x4c] sm:$0xf]
      %v1295 = vld [vmem:[%s536 + $0x50] sm:$0x1]
      %v1296 = vld [vmem:[%s536 + $0x54] sm:$0xf]
      %v1297 = vld [vmem:[%s536 + $0x58] sm:$0xf]
      %v1298 = vld [vmem:[%s536 + $0x5c] sm:$0x1]
      %s1299 = scalar_lea.vmem %s472, 6
      %v1300 = vld [vmem:[%s1299] sm:$0x3]
      %v1317 = vunpack.c.l.b16 %v1275
      %v1318 = vunpack.c.l.b16 %v1276
      %v1319 = vunpack.c.l.b16 %v1278
      %v1320 = vunpack.c.l.b16 %v1279
      %v1321 = vunpack.c.l.b16 %v1281
      %v1322 = vunpack.c.l.b16 %v1282
      %v1323 = vunpack.c.l.b16 %v1284
      %v1324 = vunpack.c.l.b16 %v1285
      %v1325 = vunpack.c.l.b16 %v1287
      %v1326 = vunpack.c.l.b16 %v1288
      %v1327 = vunpack.c.l.b16 %v1290
      %v1328 = vunpack.c.l.b16 %v1291
      %v1329 = vunpack.c.l.b16 %v1293
      %v1330 = vunpack.c.l.b16 %v1294
      %v1331 = vunpack.c.l.b16 %v1296
      %v1332 = vunpack.c.l.b16 %v1297
      %v1333 = vpack.c.b16 %v1318, %v1317
      %v1334 = vpack.c.b16 %v1320, %v1319
      %v1335 = vpack.c.b16 %v1322, %v1321
      %v1336 = vpack.c.b16 %v1324, %v1323
      %v1337 = vpack.c.b16 %v1326, %v1325
      %v1338 = vpack.c.b16 %v1328, %v1327
      %v1339 = vpack.c.b16 %v1330, %v1329
      %v1340 = vpack.c.b16 %v1332, %v1331
      %v1342 = vsel %vm680, %v1333, 0
      %v1345 = vsel %vm680, %v1334, 0
      %v1348 = vsel %vm680, %v1335, 0
      %v1351 = vsel %vm680, %v1336, 0
      %v1354 = vsel %vm680, %v1337, 0
      %v1357 = vsel %vm680, %v1338, 0
      %v1360 = vsel %vm680, %v1339, 0
      %v1363 = vsel %vm680, %v1340, 0
      %v1366 = vand.u32 %v1300, %v708
      %1368 = vmatpush.bf16.msra.mxu0 0
      %1369 = vmatpush.bf16.msra.mxu0 0
      %1370 = vmatpush.bf16.msra.mxu0 0
      %1371 = vmatpush.bf16.msra.mxu0 0
      %1372 = vmatpush.bf16.msra.mxu0 0
      %1373 = vmatpush.bf16.msra.mxu0 0
      %1374 = vmatpush.bf16.msra.mxu0 0
      %1375 = vmatpush.bf16.msra.mxu0 %v1366
      %1376 = vmatmul.bf16.gmra.mxu0 %v1342
      %v1377 = vpop.f32.mrf.mxu0
      %v1378 = vadd.f32 0.0, %v1377
      %v1379 = vpop.f32.mrf.mxu0
      %v1380 = vadd.f32 0.0, %v1379
      %1381 = vmatmul.bf16.gmra.mxu0 %v1345
      %v1382 = vpop.f32.mrf.mxu0
      %v1383 = vadd.f32 0.0, %v1382
      %v1384 = vpop.f32.mrf.mxu0
      %v1385 = vadd.f32 0.0, %v1384
      %1386 = vmatmul.bf16.gmra.mxu0 %v1348
      %v1387 = vpop.f32.mrf.mxu0
      %v1388 = vadd.f32 0.0, %v1387
      %v1389 = vpop.f32.mrf.mxu0
      %v1390 = vadd.f32 0.0, %v1389
      %1391 = vmatmul.bf16.gmra.mxu0 %v1351
      %v1392 = vpop.f32.mrf.mxu0
      %v1393 = vadd.f32 0.0, %v1392
      %v1394 = vpop.f32.mrf.mxu0
      %v1395 = vadd.f32 0.0, %v1394
      %1396 = vmatmul.bf16.gmra.mxu0 %v1354
      %v1397 = vpop.f32.mrf.mxu0
      %v1398 = vadd.f32 0.0, %v1397
      %v1399 = vpop.f32.mrf.mxu0
      %v1400 = vadd.f32 0.0, %v1399
      %1401 = vmatmul.bf16.gmra.mxu0 %v1357
      %v1402 = vpop.f32.mrf.mxu0
      %v1403 = vadd.f32 0.0, %v1402
      %v1404 = vpop.f32.mrf.mxu0
      %v1405 = vadd.f32 0.0, %v1404
      %1406 = vmatmul.bf16.gmra.mxu0 %v1360
      %v1407 = vpop.f32.mrf.mxu0
      %v1408 = vadd.f32 0.0, %v1407
      %v1409 = vpop.f32.mrf.mxu0
      %v1410 = vadd.f32 0.0, %v1409
      %1411 = vmatmul.bf16.gmra.mxu0 %v1363
      %v1412 = vpop.f32.mrf.mxu0
      %v1413 = vadd.f32 0.0, %v1412
      %v1414 = vpop.f32.mrf.mxu0
      %v1415 = vadd.f32 0.0, %v1414
      %1416 = vdwg.mxu0
      %v1417 = vadd.f32 %v1259, %v1378
      %v1418 = vadd.f32 %v1260, %v1380
      %v1419 = vadd.f32 %v1261, %v1383
      %v1420 = vadd.f32 %v1262, %v1385
      %v1421 = vadd.f32 %v1263, %v1388
      %v1422 = vadd.f32 %v1264, %v1390
      %v1423 = vadd.f32 %v1265, %v1393
      %v1424 = vadd.f32 %v1266, %v1395
      %v1425 = vadd.f32 %v1267, %v1398
      %v1426 = vadd.f32 %v1268, %v1400
      %v1427 = vadd.f32 %v1269, %v1403
      %v1428 = vadd.f32 %v1270, %v1405
      %v1429 = vadd.f32 %v1271, %v1408
      %v1430 = vadd.f32 %v1272, %v1410
      %v1431 = vadd.f32 %v1273, %v1413
      %v1432 = vadd.f32 %v1274, %v1415
      %v1434 = vshrl.u32 %v1275, 16
      %v1436 = vrot.slane %v1434, 4
      %v1437 = vshll.u32 %v1275, 16
      %v1439 = vrot.slane %v1437, 5
      %v1440 = vor.u32 %v1436, %v1439
      %v1441 = vrot.slane %v1440, 4
      %v1443 = vshll.u32 %v1276, 16
      %v1445 = vrot.slane %v1443, 5
      %v1446 = vsel %vm779, %v1441, %v1445
      %v1447 = vshrl.u32 %v1276, 16
      %v1449 = vrot.slane %v1447, 4
      %v1450 = vor.u32 %v1449, %v1445
      %v1451 = vrot.slane %v1450, 4
      %v1453 = vshll.u32 %v1277, 16
      %v1455 = vrot.slane %v1453, 5
      %v1456 = vsel %vm779, %v1451, %v1455
      %v1458 = vshrl.u32 %v1278, 16
      %v1460 = vrot.slane %v1458, 4
      %v1461 = vshll.u32 %v1278, 16
      %v1463 = vrot.slane %v1461, 5
      %v1464 = vor.u32 %v1460, %v1463
      %v1465 = vrot.slane %v1464, 4
      %v1467 = vshll.u32 %v1279, 16
      %v1469 = vrot.slane %v1467, 5
      %v1470 = vsel %vm779, %v1465, %v1469
      %v1471 = vshrl.u32 %v1279, 16
      %v1473 = vrot.slane %v1471, 4
      %v1474 = vor.u32 %v1473, %v1469
      %v1475 = vrot.slane %v1474, 4
      %v1477 = vshll.u32 %v1280, 16
      %v1479 = vrot.slane %v1477, 5
      %v1480 = vsel %vm779, %v1475, %v1479
      %v1482 = vshrl.u32 %v1281, 16
      %v1484 = vrot.slane %v1482, 4
      %v1485 = vshll.u32 %v1281, 16
      %v1487 = vrot.slane %v1485, 5
      %v1488 = vor.u32 %v1484, %v1487
      %v1489 = vrot.slane %v1488, 4
      %v1491 = vshll.u32 %v1282, 16
      %v1493 = vrot.slane %v1491, 5
      %v1494 = vsel %vm779, %v1489, %v1493
      %v1495 = vshrl.u32 %v1282, 16
      %v1497 = vrot.slane %v1495, 4
      %v1498 = vor.u32 %v1497, %v1493
      %v1499 = vrot.slane %v1498, 4
      %v1501 = vshll.u32 %v1283, 16
      %v1503 = vrot.slane %v1501, 5
      %v1504 = vsel %vm779, %v1499, %v1503
      %v1506 = vshrl.u32 %v1284, 16
      %v1508 = vrot.slane %v1506, 4
      %v1509 = vshll.u32 %v1284, 16
      %v1511 = vrot.slane %v1509, 5
      %v1512 = vor.u32 %v1508, %v1511
      %v1513 = vrot.slane %v1512, 4
      %v1515 = vshll.u32 %v1285, 16
      %v1517 = vrot.slane %v1515, 5
      %v1518 = vsel %vm779, %v1513, %v1517
      %v1519 = vshrl.u32 %v1285, 16
      %v1521 = vrot.slane %v1519, 4
      %v1522 = vor.u32 %v1521, %v1517
      %v1523 = vrot.slane %v1522, 4
      %v1525 = vshll.u32 %v1286, 16
      %v1527 = vrot.slane %v1525, 5
      %v1528 = vsel %vm779, %v1523, %v1527
      %v1530 = vshrl.u32 %v1287, 16
      %v1532 = vrot.slane %v1530, 4
      %v1533 = vshll.u32 %v1287, 16
      %v1535 = vrot.slane %v1533, 5
      %v1536 = vor.u32 %v1532, %v1535
      %v1537 = vrot.slane %v1536, 4
      %v1539 = vshll.u32 %v1288, 16
      %v1541 = vrot.slane %v1539, 5
      %v1542 = vsel %vm779, %v1537, %v1541
      %v1543 = vshrl.u32 %v1288, 16
      %v1545 = vrot.slane %v1543, 4
      %v1546 = vor.u32 %v1545, %v1541
      %v1547 = vrot.slane %v1546, 4
      %v1549 = vshll.u32 %v1289, 16
      %v1551 = vrot.slane %v1549, 5
      %v1552 = vsel %vm779, %v1547, %v1551
      %v1554 = vshrl.u32 %v1290, 16
      %v1556 = vrot.slane %v1554, 4
      %v1557 = vshll.u32 %v1290, 16
      %v1559 = vrot.slane %v1557, 5
      %v1560 = vor.u32 %v1556, %v1559
      %v1561 = vrot.slane %v1560, 4
      %v1563 = vshll.u32 %v1291, 16
      %v1565 = vrot.slane %v1563, 5
      %v1566 = vsel %vm779, %v1561, %v1565
      %v1567 = vshrl.u32 %v1291, 16
      %v1569 = vrot.slane %v1567, 4
      %v1570 = vor.u32 %v1569, %v1565
      %v1571 = vrot.slane %v1570, 4
      %v1573 = vshll.u32 %v1292, 16
      %v1575 = vrot.slane %v1573, 5
      %v1576 = vsel %vm779, %v1571, %v1575
      %v1578 = vshrl.u32 %v1293, 16
      %v1580 = vrot.slane %v1578, 4
      %v1581 = vshll.u32 %v1293, 16
      %v1583 = vrot.slane %v1581, 5
      %v1584 = vor.u32 %v1580, %v1583
      %v1585 = vrot.slane %v1584, 4
      %v1587 = vshll.u32 %v1294, 16
      %v1589 = vrot.slane %v1587, 5
      %v1590 = vsel %vm779, %v1585, %v1589
      %v1591 = vshrl.u32 %v1294, 16
      %v1593 = vrot.slane %v1591, 4
      %v1594 = vor.u32 %v1593, %v1589
      %v1595 = vrot.slane %v1594, 4
      %v1597 = vshll.u32 %v1295, 16
      %v1599 = vrot.slane %v1597, 5
      %v1600 = vsel %vm779, %v1595, %v1599
      %v1602 = vshrl.u32 %v1296, 16
      %v1604 = vrot.slane %v1602, 4
      %v1605 = vshll.u32 %v1296, 16
      %v1607 = vrot.slane %v1605, 5
      %v1608 = vor.u32 %v1604, %v1607
      %v1609 = vrot.slane %v1608, 4
      %v1611 = vshll.u32 %v1297, 16
      %v1613 = vrot.slane %v1611, 5
      %v1614 = vsel %vm779, %v1609, %v1613
      %v1615 = vshrl.u32 %v1297, 16
      %v1617 = vrot.slane %v1615, 4
      %v1618 = vor.u32 %v1617, %v1613
      %v1619 = vrot.slane %v1618, 4
      %v1621 = vshll.u32 %v1298, 16
      %v1623 = vrot.slane %v1621, 5
      %v1624 = vsel %vm779, %v1619, %v1623
      %s1625 = scalar_lea.vmem %s472, 8
      %v1626 = vld [vmem:[%s1625] sm:$0x3]
      %v1627 = vunpack.c.l.b16 %v1446
      %v1628 = vunpack.c.l.b16 %v1456
      %v1629 = vunpack.c.l.b16 %v1470
      %v1630 = vunpack.c.l.b16 %v1480
      %v1631 = vunpack.c.l.b16 %v1494
      %v1632 = vunpack.c.l.b16 %v1504
      %v1633 = vunpack.c.l.b16 %v1518
      %v1634 = vunpack.c.l.b16 %v1528
      %v1635 = vunpack.c.l.b16 %v1542
      %v1636 = vunpack.c.l.b16 %v1552
      %v1637 = vunpack.c.l.b16 %v1566
      %v1638 = vunpack.c.l.b16 %v1576
      %v1639 = vunpack.c.l.b16 %v1590
      %v1640 = vunpack.c.l.b16 %v1600
      %v1641 = vunpack.c.l.b16 %v1614
      %v1642 = vunpack.c.l.b16 %v1624
      %v1643 = vpack.c.b16 %v1628, %v1627
      %v1644 = vpack.c.b16 %v1630, %v1629
      %v1645 = vpack.c.b16 %v1632, %v1631
      %v1646 = vpack.c.b16 %v1634, %v1633
      %v1647 = vpack.c.b16 %v1636, %v1635
      %v1648 = vpack.c.b16 %v1638, %v1637
      %v1649 = vpack.c.b16 %v1640, %v1639
      %v1650 = vpack.c.b16 %v1642, %v1641
      %v1652 = vsel %vm680, %v1643, 0
      %v1655 = vsel %vm680, %v1644, 0
      %v1658 = vsel %vm680, %v1645, 0
      %v1661 = vsel %vm680, %v1646, 0
      %v1664 = vsel %vm680, %v1647, 0
      %v1667 = vsel %vm680, %v1648, 0
      %v1670 = vsel %vm680, %v1649, 0
      %v1673 = vsel %vm680, %v1650, 0
      %v1676 = vand.u32 %v1626, %v708
      %1678 = vmatpush.bf16.msra.mxu0 0
      %1679 = vmatpush.bf16.msra.mxu0 0
      %1680 = vmatpush.bf16.msra.mxu0 0
      %1681 = vmatpush.bf16.msra.mxu0 0
      %1682 = vmatpush.bf16.msra.mxu0 0
      %1683 = vmatpush.bf16.msra.mxu0 0
      %1684 = vmatpush.bf16.msra.mxu0 0
      %1685 = vmatpush.bf16.msra.mxu0 %v1676
      %1686 = vmatmul.bf16.gmra.mxu0 %v1652
      %v1687 = vpop.f32.mrf.mxu0
      %v1688 = vadd.f32 0.0, %v1687
      %v1689 = vpop.f32.mrf.mxu0
      %v1690 = vadd.f32 0.0, %v1689
      %1691 = vmatmul.bf16.gmra.mxu0 %v1655
      %v1692 = vpop.f32.mrf.mxu0
      %v1693 = vadd.f32 0.0, %v1692
      %v1694 = vpop.f32.mrf.mxu0
      %v1695 = vadd.f32 0.0, %v1694
      %1696 = vmatmul.bf16.gmra.mxu0 %v1658
      %v1697 = vpop.f32.mrf.mxu0
      %v1698 = vadd.f32 0.0, %v1697
      %v1699 = vpop.f32.mrf.mxu0
      %v1700 = vadd.f32 0.0, %v1699
      %1701 = vmatmul.bf16.gmra.mxu0 %v1661
      %v1702 = vpop.f32.mrf.mxu0
      %v1703 = vadd.f32 0.0, %v1702
      %v1704 = vpop.f32.mrf.mxu0
      %v1705 = vadd.f32 0.0, %v1704
      %1706 = vmatmul.bf16.gmra.mxu0 %v1664
      %v1707 = vpop.f32.mrf.mxu0
      %v1708 = vadd.f32 0.0, %v1707
      %v1709 = vpop.f32.mrf.mxu0
      %v1710 = vadd.f32 0.0, %v1709
      %1711 = vmatmul.bf16.gmra.mxu0 %v1667
      %v1712 = vpop.f32.mrf.mxu0
      %v1713 = vadd.f32 0.0, %v1712
      %v1714 = vpop.f32.mrf.mxu0
      %v1715 = vadd.f32 0.0, %v1714
      %1716 = vmatmul.bf16.gmra.mxu0 %v1670
      %v1717 = vpop.f32.mrf.mxu0
      %v1718 = vadd.f32 0.0, %v1717
      %v1719 = vpop.f32.mrf.mxu0
      %v1720 = vadd.f32 0.0, %v1719
      %1721 = vmatmul.bf16.gmra.mxu0 %v1673
      %v1722 = vpop.f32.mrf.mxu0
      %v1723 = vadd.f32 0.0, %v1722
      %v1724 = vpop.f32.mrf.mxu0
      %v1725 = vadd.f32 0.0, %v1724
      %1726 = vdwg.mxu0
      %v1727 = vadd.f32 %v1417, %v1688
      %v1728 = vadd.f32 %v1418, %v1690
      %v1729 = vadd.f32 %v1419, %v1693
      %v1730 = vadd.f32 %v1420, %v1695
      %v1731 = vadd.f32 %v1421, %v1698
      %v1732 = vadd.f32 %v1422, %v1700
      %v1733 = vadd.f32 %v1423, %v1703
      %v1734 = vadd.f32 %v1424, %v1705
      %v1735 = vadd.f32 %v1425, %v1708
      %v1736 = vadd.f32 %v1426, %v1710
      %v1737 = vadd.f32 %v1427, %v1713
      %v1738 = vadd.f32 %v1428, %v1715
      %v1739 = vadd.f32 %v1429, %v1718
      %v1740 = vadd.f32 %v1430, %v1720
      %v1741 = vadd.f32 %v1431, %v1723
      %v1742 = vadd.f32 %v1432, %v1725
      %v1751 = vrot.slane %v1275, 5
      %v1752 = vrot.slane %v1751, 4
      %v1753 = vrot.slane %v1276, 5
      %v1754 = vsel %vm1100, %v1752, %v1753
      %v1755 = vrot.slane %v1753, 4
      %v1756 = vrot.slane %v1277, 5
      %v1757 = vsel %vm1100, %v1755, %v1756
      %v1758 = vrot.slane %v1278, 5
      %v1759 = vrot.slane %v1758, 4
      %v1760 = vrot.slane %v1279, 5
      %v1761 = vsel %vm1100, %v1759, %v1760
      %v1762 = vrot.slane %v1760, 4
      %v1763 = vrot.slane %v1280, 5
      %v1764 = vsel %vm1100, %v1762, %v1763
      %v1765 = vrot.slane %v1281, 5
      %v1766 = vrot.slane %v1765, 4
      %v1767 = vrot.slane %v1282, 5
      %v1768 = vsel %vm1100, %v1766, %v1767
      %v1769 = vrot.slane %v1767, 4
      %v1770 = vrot.slane %v1283, 5
      %v1771 = vsel %vm1100, %v1769, %v1770
      %v1772 = vrot.slane %v1284, 5
      %v1773 = vrot.slane %v1772, 4
      %v1774 = vrot.slane %v1285, 5
      %v1775 = vsel %vm1100, %v1773, %v1774
      %v1776 = vrot.slane %v1774, 4
      %v1777 = vrot.slane %v1286, 5
      %v1778 = vsel %vm1100, %v1776, %v1777
      %v1779 = vrot.slane %v1287, 5
      %v1780 = vrot.slane %v1779, 4
      %v1781 = vrot.slane %v1288, 5
      %v1782 = vsel %vm1100, %v1780, %v1781
      %v1783 = vrot.slane %v1781, 4
      %v1784 = vrot.slane %v1289, 5
      %v1785 = vsel %vm1100, %v1783, %v1784
      %v1786 = vrot.slane %v1290, 5
      %v1787 = vrot.slane %v1786, 4
      %v1788 = vrot.slane %v1291, 5
      %v1789 = vsel %vm1100, %v1787, %v1788
      %v1790 = vrot.slane %v1788, 4
      %v1791 = vrot.slane %v1292, 5
      %v1792 = vsel %vm1100, %v1790, %v1791
      %v1793 = vrot.slane %v1293, 5
      %v1794 = vrot.slane %v1793, 4
      %v1795 = vrot.slane %v1294, 5
      %v1796 = vsel %vm1100, %v1794, %v1795
      %v1797 = vrot.slane %v1795, 4
      %v1798 = vrot.slane %v1295, 5
      %v1799 = vsel %vm1100, %v1797, %v1798
      %v1800 = vrot.slane %v1296, 5
      %v1801 = vrot.slane %v1800, 4
      %v1802 = vrot.slane %v1297, 5
      %v1803 = vsel %vm1100, %v1801, %v1802
      %v1804 = vrot.slane %v1802, 4
      %v1805 = vrot.slane %v1298, 5
      %v1806 = vsel %vm1100, %v1804, %v1805
      %s1807 = scalar_lea.vmem %s472, 10
      %v1808 = vld [vmem:[%s1807] sm:$0x3]
      %v1809 = vunpack.c.l.b16 %v1754
      %v1810 = vunpack.c.l.b16 %v1757
      %v1811 = vunpack.c.l.b16 %v1761
      %v1812 = vunpack.c.l.b16 %v1764
      %v1813 = vunpack.c.l.b16 %v1768
      %v1814 = vunpack.c.l.b16 %v1771
      %v1815 = vunpack.c.l.b16 %v1775
      %v1816 = vunpack.c.l.b16 %v1778
      %v1817 = vunpack.c.l.b16 %v1782
      %v1818 = vunpack.c.l.b16 %v1785
      %v1819 = vunpack.c.l.b16 %v1789
      %v1820 = vunpack.c.l.b16 %v1792
      %v1821 = vunpack.c.l.b16 %v1796
      %v1822 = vunpack.c.l.b16 %v1799
      %v1823 = vunpack.c.l.b16 %v1803
      %v1824 = vunpack.c.l.b16 %v1806
      %v1825 = vpack.c.b16 %v1810, %v1809
      %v1826 = vpack.c.b16 %v1812, %v1811
      %v1827 = vpack.c.b16 %v1814, %v1813
      %v1828 = vpack.c.b16 %v1816, %v1815
      %v1829 = vpack.c.b16 %v1818, %v1817
      %v1830 = vpack.c.b16 %v1820, %v1819
      %v1831 = vpack.c.b16 %v1822, %v1821
      %v1832 = vpack.c.b16 %v1824, %v1823
      %v1834 = vsel %vm680, %v1825, 0
      %v1837 = vsel %vm680, %v1826, 0
      %v1840 = vsel %vm680, %v1827, 0
      %v1843 = vsel %vm680, %v1828, 0
      %v1846 = vsel %vm680, %v1829, 0
      %v1849 = vsel %vm680, %v1830, 0
      %v1852 = vsel %vm680, %v1831, 0
      %v1855 = vsel %vm680, %v1832, 0
      %v1858 = vand.u32 %v1808, %v708
      %1860 = vmatpush.bf16.msra.mxu0 0
      %1861 = vmatpush.bf16.msra.mxu0 0
      %1862 = vmatpush.bf16.msra.mxu0 0
      %1863 = vmatpush.bf16.msra.mxu0 0
      %1864 = vmatpush.bf16.msra.mxu0 0
      %1865 = vmatpush.bf16.msra.mxu0 0
      %1866 = vmatpush.bf16.msra.mxu0 0
      %1867 = vmatpush.bf16.msra.mxu0 %v1858
      %1868 = vmatmul.bf16.gmra.mxu0 %v1834
      %v1869 = vpop.f32.mrf.mxu0
      %v1870 = vadd.f32 0.0, %v1869
      %v1871 = vpop.f32.mrf.mxu0
      %v1872 = vadd.f32 0.0, %v1871
      %1873 = vmatmul.bf16.gmra.mxu0 %v1837
      %v1874 = vpop.f32.mrf.mxu0
      %v1875 = vadd.f32 0.0, %v1874
      %v1876 = vpop.f32.mrf.mxu0
      %v1877 = vadd.f32 0.0, %v1876
      %1878 = vmatmul.bf16.gmra.mxu0 %v1840
      %v1879 = vpop.f32.mrf.mxu0
      %v1880 = vadd.f32 0.0, %v1879
      %v1881 = vpop.f32.mrf.mxu0
      %v1882 = vadd.f32 0.0, %v1881
      %1883 = vmatmul.bf16.gmra.mxu0 %v1843
      %v1884 = vpop.f32.mrf.mxu0
      %v1885 = vadd.f32 0.0, %v1884
      %v1886 = vpop.f32.mrf.mxu0
      %v1887 = vadd.f32 0.0, %v1886
      %1888 = vmatmul.bf16.gmra.mxu0 %v1846
      %v1889 = vpop.f32.mrf.mxu0
      %v1890 = vadd.f32 0.0, %v1889
      %v1891 = vpop.f32.mrf.mxu0
      %v1892 = vadd.f32 0.0, %v1891
      %1893 = vmatmul.bf16.gmra.mxu0 %v1849
      %v1894 = vpop.f32.mrf.mxu0
      %v1895 = vadd.f32 0.0, %v1894
      %v1896 = vpop.f32.mrf.mxu0
      %v1897 = vadd.f32 0.0, %v1896
      %1898 = vmatmul.bf16.gmra.mxu0 %v1852
      %v1899 = vpop.f32.mrf.mxu0
      %v1900 = vadd.f32 0.0, %v1899
      %v1901 = vpop.f32.mrf.mxu0
      %v1902 = vadd.f32 0.0, %v1901
      %1903 = vmatmul.bf16.gmra.mxu0 %v1855
      %v1904 = vpop.f32.mrf.mxu0
      %v1905 = vadd.f32 0.0, %v1904
      %v1906 = vpop.f32.mrf.mxu0
      %v1907 = vadd.f32 0.0, %v1906
      %1908 = vdwg.mxu0
      %v1909 = vadd.f32 %v1727, %v1870
      %v1910 = vadd.f32 %v1728, %v1872
      %v1911 = vadd.f32 %v1729, %v1875
      %v1912 = vadd.f32 %v1730, %v1877
      %v1913 = vadd.f32 %v1731, %v1880
      %v1914 = vadd.f32 %v1732, %v1882
      %v1915 = vadd.f32 %v1733, %v1885
      %v1916 = vadd.f32 %v1734, %v1887
      %v1917 = vadd.f32 %v1735, %v1890
      %v1918 = vadd.f32 %v1736, %v1892
      %v1919 = vadd.f32 %v1737, %v1895
      %v1920 = vadd.f32 %v1738, %v1897
      %v1921 = vadd.f32 %v1739, %v1900
      %v1922 = vadd.f32 %v1740, %v1902
      %v1923 = vadd.f32 %v1741, %v1905
      %v1924 = vadd.f32 %v1742, %v1907
      %s1925 = scalar_lea.vmem [#allocation2], 24
      %v1926 = vld [vmem:[%s1925] sm:$0xf]
      %v1927 = vld [vmem:[%s1925 + $0x4] sm:$0xf]
      %v1928 = vld [vmem:[%s1925 + $0x8] sm:$0x1]
      %v1929 = vld [vmem:[%s1925 + $0xc] sm:$0xf]
      %v1930 = vld [vmem:[%s1925 + $0x10] sm:$0xf]
      %v1931 = vld [vmem:[%s1925 + $0x14] sm:$0x1]
      %v1932 = vld [vmem:[%s1925 + $0x18] sm:$0xf]
      %v1933 = vld [vmem:[%s1925 + $0x1c] sm:$0xf]
      %v1934 = vld [vmem:[%s1925 + $0x20] sm:$0x1]
      %v1935 = vld [vmem:[%s1925 + $0x24] sm:$0xf]
      %v1936 = vld [vmem:[%s1925 + $0x28] sm:$0xf]
      %v1937 = vld [vmem:[%s1925 + $0x2c] sm:$0x1]
      %v1938 = vld [vmem:[%s1925 + $0x30] sm:$0xf]
      %v1939 = vld [vmem:[%s1925 + $0x34] sm:$0xf]
      %v1940 = vld [vmem:[%s1925 + $0x38] sm:$0x1]
      %v1941 = vld [vmem:[%s1925 + $0x3c] sm:$0xf]
      %v1942 = vld [vmem:[%s1925 + $0x40] sm:$0xf]
      %v1943 = vld [vmem:[%s1925 + $0x44] sm:$0x1]
      %v1944 = vld [vmem:[%s1925 + $0x48] sm:$0xf]
      %v1945 = vld [vmem:[%s1925 + $0x4c] sm:$0xf]
      %v1946 = vld [vmem:[%s1925 + $0x50] sm:$0x1]
      %v1947 = vld [vmem:[%s1925 + $0x54] sm:$0xf]
      %v1948 = vld [vmem:[%s1925 + $0x58] sm:$0xf]
      %v1949 = vld [vmem:[%s1925 + $0x5c] sm:$0x1]
      %s1950 = scalar_lea.vmem %s472, 12
      %v1951 = vld [vmem:[%s1950] sm:$0x3]
      %v1968 = vunpack.c.l.b16 %v1926
      %v1969 = vunpack.c.l.b16 %v1927
      %v1970 = vunpack.c.l.b16 %v1929
      %v1971 = vunpack.c.l.b16 %v1930
      %v1972 = vunpack.c.l.b16 %v1932
      %v1973 = vunpack.c.l.b16 %v1933
      %v1974 = vunpack.c.l.b16 %v1935
      %v1975 = vunpack.c.l.b16 %v1936
      %v1976 = vunpack.c.l.b16 %v1938
      %v1977 = vunpack.c.l.b16 %v1939
      %v1978 = vunpack.c.l.b16 %v1941
      %v1979 = vunpack.c.l.b16 %v1942
      %v1980 = vunpack.c.l.b16 %v1944
      %v1981 = vunpack.c.l.b16 %v1945
      %v1982 = vunpack.c.l.b16 %v1947
      %v1983 = vunpack.c.l.b16 %v1948
      %v1984 = vpack.c.b16 %v1969, %v1968
      %v1985 = vpack.c.b16 %v1971, %v1970
      %v1986 = vpack.c.b16 %v1973, %v1972
      %v1987 = vpack.c.b16 %v1975, %v1974
      %v1988 = vpack.c.b16 %v1977, %v1976
      %v1989 = vpack.c.b16 %v1979, %v1978
      %v1990 = vpack.c.b16 %v1981, %v1980
      %v1991 = vpack.c.b16 %v1983, %v1982
      %v1993 = vsel %vm680, %v1984, 0
      %v1996 = vsel %vm680, %v1985, 0
      %v1999 = vsel %vm680, %v1986, 0
      %v2002 = vsel %vm680, %v1987, 0
      %v2005 = vsel %vm680, %v1988, 0
      %v2008 = vsel %vm680, %v1989, 0
      %v2011 = vsel %vm680, %v1990, 0
      %v2014 = vsel %vm680, %v1991, 0
      %v2017 = vand.u32 %v1951, %v708
      %2019 = vmatpush.bf16.msra.mxu0 0
      %2020 = vmatpush.bf16.msra.mxu0 0
      %2021 = vmatpush.bf16.msra.mxu0 0
      %2022 = vmatpush.bf16.msra.mxu0 0
      %2023 = vmatpush.bf16.msra.mxu0 0
      %2024 = vmatpush.bf16.msra.mxu0 0
      %2025 = vmatpush.bf16.msra.mxu0 0
      %2026 = vmatpush.bf16.msra.mxu0 %v2017
      %2027 = vmatmul.bf16.gmra.mxu0 %v1993
      %v2028 = vpop.f32.mrf.mxu0
      %v2029 = vadd.f32 0.0, %v2028
      %v2030 = vpop.f32.mrf.mxu0
      %v2031 = vadd.f32 0.0, %v2030
      %2032 = vmatmul.bf16.gmra.mxu0 %v1996
      %v2033 = vpop.f32.mrf.mxu0
      %v2034 = vadd.f32 0.0, %v2033
      %v2035 = vpop.f32.mrf.mxu0
      %v2036 = vadd.f32 0.0, %v2035
      %2037 = vmatmul.bf16.gmra.mxu0 %v1999
      %v2038 = vpop.f32.mrf.mxu0
      %v2039 = vadd.f32 0.0, %v2038
      %v2040 = vpop.f32.mrf.mxu0
      %v2041 = vadd.f32 0.0, %v2040
      %2042 = vmatmul.bf16.gmra.mxu0 %v2002
      %v2043 = vpop.f32.mrf.mxu0
      %v2044 = vadd.f32 0.0, %v2043
      %v2045 = vpop.f32.mrf.mxu0
      %v2046 = vadd.f32 0.0, %v2045
      %2047 = vmatmul.bf16.gmra.mxu0 %v2005
      %v2048 = vpop.f32.mrf.mxu0
      %v2049 = vadd.f32 0.0, %v2048
      %v2050 = vpop.f32.mrf.mxu0
      %v2051 = vadd.f32 0.0, %v2050
      %2052 = vmatmul.bf16.gmra.mxu0 %v2008
      %v2053 = vpop.f32.mrf.mxu0
      %v2054 = vadd.f32 0.0, %v2053
      %v2055 = vpop.f32.mrf.mxu0
      %v2056 = vadd.f32 0.0, %v2055
      %2057 = vmatmul.bf16.gmra.mxu0 %v2011
      %v2058 = vpop.f32.mrf.mxu0
      %v2059 = vadd.f32 0.0, %v2058
      %v2060 = vpop.f32.mrf.mxu0
      %v2061 = vadd.f32 0.0, %v2060
      %2062 = vmatmul.bf16.gmra.mxu0 %v2014
      %v2063 = vpop.f32.mrf.mxu0
      %v2064 = vadd.f32 0.0, %v2063
      %v2065 = vpop.f32.mrf.mxu0
      %v2066 = vadd.f32 0.0, %v2065
      %2067 = vdwg.mxu0
      %v2068 = vadd.f32 %v1909, %v2029
      %v2069 = vadd.f32 %v1910, %v2031
      %v2070 = vadd.f32 %v1911, %v2034
      %v2071 = vadd.f32 %v1912, %v2036
      %v2072 = vadd.f32 %v1913, %v2039
      %v2073 = vadd.f32 %v1914, %v2041
      %v2074 = vadd.f32 %v1915, %v2044
      %v2075 = vadd.f32 %v1916, %v2046
      %v2076 = vadd.f32 %v1917, %v2049
      %v2077 = vadd.f32 %v1918, %v2051
      %v2078 = vadd.f32 %v1919, %v2054
      %v2079 = vadd.f32 %v1920, %v2056
      %v2080 = vadd.f32 %v1921, %v2059
      %v2081 = vadd.f32 %v1922, %v2061
      %v2082 = vadd.f32 %v1923, %v2064
      %v2083 = vadd.f32 %v1924, %v2066
      %v2085 = vshrl.u32 %v1926, 16
      %v2087 = vrot.slane %v2085, 4
      %v2088 = vshll.u32 %v1926, 16
      %v2090 = vrot.slane %v2088, 5
      %v2091 = vor.u32 %v2087, %v2090
      %v2092 = vrot.slane %v2091, 4
      %v2094 = vshll.u32 %v1927, 16
      %v2096 = vrot.slane %v2094, 5
      %v2097 = vsel %vm779, %v2092, %v2096
      %v2098 = vshrl.u32 %v1927, 16
      %v2100 = vrot.slane %v2098, 4
      %v2101 = vor.u32 %v2100, %v2096
      %v2102 = vrot.slane %v2101, 4
      %v2104 = vshll.u32 %v1928, 16
      %v2106 = vrot.slane %v2104, 5
      %v2107 = vsel %vm779, %v2102, %v2106
      %v2109 = vshrl.u32 %v1929, 16
      %v2111 = vrot.slane %v2109, 4
      %v2112 = vshll.u32 %v1929, 16
      %v2114 = vrot.slane %v2112, 5
      %v2115 = vor.u32 %v2111, %v2114
      %v2116 = vrot.slane %v2115, 4
      %v2118 = vshll.u32 %v1930, 16
      %v2120 = vrot.slane %v2118, 5
      %v2121 = vsel %vm779, %v2116, %v2120
      %v2122 = vshrl.u32 %v1930, 16
      %v2124 = vrot.slane %v2122, 4
      %v2125 = vor.u32 %v2124, %v2120
      %v2126 = vrot.slane %v2125, 4
      %v2128 = vshll.u32 %v1931, 16
      %v2130 = vrot.slane %v2128, 5
      %v2131 = vsel %vm779, %v2126, %v2130
      %v2133 = vshrl.u32 %v1932, 16
      %v2135 = vrot.slane %v2133, 4
      %v2136 = vshll.u32 %v1932, 16
      %v2138 = vrot.slane %v2136, 5
      %v2139 = vor.u32 %v2135, %v2138
      %v2140 = vrot.slane %v2139, 4
      %v2142 = vshll.u32 %v1933, 16
      %v2144 = vrot.slane %v2142, 5
      %v2145 = vsel %vm779, %v2140, %v2144
      %v2146 = vshrl.u32 %v1933, 16
      %v2148 = vrot.slane %v2146, 4
      %v2149 = vor.u32 %v2148, %v2144
      %v2150 = vrot.slane %v2149, 4
      %v2152 = vshll.u32 %v1934, 16
      %v2154 = vrot.slane %v2152, 5
      %v2155 = vsel %vm779, %v2150, %v2154
      %v2157 = vshrl.u32 %v1935, 16
      %v2159 = vrot.slane %v2157, 4
      %v2160 = vshll.u32 %v1935, 16
      %v2162 = vrot.slane %v2160, 5
      %v2163 = vor.u32 %v2159, %v2162
      %v2164 = vrot.slane %v2163, 4
      %v2166 = vshll.u32 %v1936, 16
      %v2168 = vrot.slane %v2166, 5
      %v2169 = vsel %vm779, %v2164, %v2168
      %v2170 = vshrl.u32 %v1936, 16
      %v2172 = vrot.slane %v2170, 4
      %v2173 = vor.u32 %v2172, %v2168
      %v2174 = vrot.slane %v2173, 4
      %v2176 = vshll.u32 %v1937, 16
      %v2178 = vrot.slane %v2176, 5
      %v2179 = vsel %vm779, %v2174, %v2178
      %v2181 = vshrl.u32 %v1938, 16
      %v2183 = vrot.slane %v2181, 4
      %v2184 = vshll.u32 %v1938, 16
      %v2186 = vrot.slane %v2184, 5
      %v2187 = vor.u32 %v2183, %v2186
      %v2188 = vrot.slane %v2187, 4
      %v2190 = vshll.u32 %v1939, 16
      %v2192 = vrot.slane %v2190, 5
      %v2193 = vsel %vm779, %v2188, %v2192
      %v2194 = vshrl.u32 %v1939, 16
      %v2196 = vrot.slane %v2194, 4
      %v2197 = vor.u32 %v2196, %v2192
      %v2198 = vrot.slane %v2197, 4
      %v2200 = vshll.u32 %v1940, 16
      %v2202 = vrot.slane %v2200, 5
      %v2203 = vsel %vm779, %v2198, %v2202
      %v2205 = vshrl.u32 %v1941, 16
      %v2207 = vrot.slane %v2205, 4
      %v2208 = vshll.u32 %v1941, 16
      %v2210 = vrot.slane %v2208, 5
      %v2211 = vor.u32 %v2207, %v2210
      %v2212 = vrot.slane %v2211, 4
      %v2214 = vshll.u32 %v1942, 16
      %v2216 = vrot.slane %v2214, 5
      %v2217 = vsel %vm779, %v2212, %v2216
      %v2218 = vshrl.u32 %v1942, 16
      %v2220 = vrot.slane %v2218, 4
      %v2221 = vor.u32 %v2220, %v2216
      %v2222 = vrot.slane %v2221, 4
      %v2224 = vshll.u32 %v1943, 16
      %v2226 = vrot.slane %v2224, 5
      %v2227 = vsel %vm779, %v2222, %v2226
      %v2229 = vshrl.u32 %v1944, 16
      %v2231 = vrot.slane %v2229, 4
      %v2232 = vshll.u32 %v1944, 16
      %v2234 = vrot.slane %v2232, 5
      %v2235 = vor.u32 %v2231, %v2234
      %v2236 = vrot.slane %v2235, 4
      %v2238 = vshll.u32 %v1945, 16
      %v2240 = vrot.slane %v2238, 5
      %v2241 = vsel %vm779, %v2236, %v2240
      %v2242 = vshrl.u32 %v1945, 16
      %v2244 = vrot.slane %v2242, 4
      %v2245 = vor.u32 %v2244, %v2240
      %v2246 = vrot.slane %v2245, 4
      %v2248 = vshll.u32 %v1946, 16
      %v2250 = vrot.slane %v2248, 5
      %v2251 = vsel %vm779, %v2246, %v2250
      %v2253 = vshrl.u32 %v1947, 16
      %v2255 = vrot.slane %v2253, 4
      %v2256 = vshll.u32 %v1947, 16
      %v2258 = vrot.slane %v2256, 5
      %v2259 = vor.u32 %v2255, %v2258
      %v2260 = vrot.slane %v2259, 4
      %v2262 = vshll.u32 %v1948, 16
      %v2264 = vrot.slane %v2262, 5
      %v2265 = vsel %vm779, %v2260, %v2264
      %v2266 = vshrl.u32 %v1948, 16
      %v2268 = vrot.slane %v2266, 4
      %v2269 = vor.u32 %v2268, %v2264
      %v2270 = vrot.slane %v2269, 4
      %v2272 = vshll.u32 %v1949, 16
      %v2274 = vrot.slane %v2272, 5
      %v2275 = vsel %vm779, %v2270, %v2274
      %s2276 = scalar_lea.vmem %s472, 14
      %v2277 = vld [vmem:[%s2276] sm:$0x3]
      %v2278 = vunpack.c.l.b16 %v2097
      %v2279 = vunpack.c.l.b16 %v2107
      %v2280 = vunpack.c.l.b16 %v2121
      %v2281 = vunpack.c.l.b16 %v2131
      %v2282 = vunpack.c.l.b16 %v2145
      %v2283 = vunpack.c.l.b16 %v2155
      %v2284 = vunpack.c.l.b16 %v2169
      %v2285 = vunpack.c.l.b16 %v2179
      %v2286 = vunpack.c.l.b16 %v2193
      %v2287 = vunpack.c.l.b16 %v2203
      %v2288 = vunpack.c.l.b16 %v2217
      %v2289 = vunpack.c.l.b16 %v2227
      %v2290 = vunpack.c.l.b16 %v2241
      %v2291 = vunpack.c.l.b16 %v2251
      %v2292 = vunpack.c.l.b16 %v2265
      %v2293 = vunpack.c.l.b16 %v2275
      %v2294 = vpack.c.b16 %v2279, %v2278
      %v2295 = vpack.c.b16 %v2281, %v2280
      %v2296 = vpack.c.b16 %v2283, %v2282
      %v2297 = vpack.c.b16 %v2285, %v2284
      %v2298 = vpack.c.b16 %v2287, %v2286
      %v2299 = vpack.c.b16 %v2289, %v2288
      %v2300 = vpack.c.b16 %v2291, %v2290
      %v2301 = vpack.c.b16 %v2293, %v2292
      %v2303 = vsel %vm680, %v2294, 0
      %v2306 = vsel %vm680, %v2295, 0
      %v2309 = vsel %vm680, %v2296, 0
      %v2312 = vsel %vm680, %v2297, 0
      %v2315 = vsel %vm680, %v2298, 0
      %v2318 = vsel %vm680, %v2299, 0
      %v2321 = vsel %vm680, %v2300, 0
      %v2324 = vsel %vm680, %v2301, 0
      %v2327 = vand.u32 %v2277, %v708
      %2329 = vmatpush.bf16.msra.mxu0 0
      %2330 = vmatpush.bf16.msra.mxu0 0
      %2331 = vmatpush.bf16.msra.mxu0 0
      %2332 = vmatpush.bf16.msra.mxu0 0
      %2333 = vmatpush.bf16.msra.mxu0 0
      %2334 = vmatpush.bf16.msra.mxu0 0
      %2335 = vmatpush.bf16.msra.mxu0 0
      %2336 = vmatpush.bf16.msra.mxu0 %v2327
      %2337 = vmatmul.bf16.gmra.mxu0 %v2303
      %v2338 = vpop.f32.mrf.mxu0
      %v2339 = vadd.f32 0.0, %v2338
      %v2340 = vpop.f32.mrf.mxu0
      %v2341 = vadd.f32 0.0, %v2340
      %2342 = vmatmul.bf16.gmra.mxu0 %v2306
      %v2343 = vpop.f32.mrf.mxu0
      %v2344 = vadd.f32 0.0, %v2343
      %v2345 = vpop.f32.mrf.mxu0
      %v2346 = vadd.f32 0.0, %v2345
      %2347 = vmatmul.bf16.gmra.mxu0 %v2309
      %v2348 = vpop.f32.mrf.mxu0
      %v2349 = vadd.f32 0.0, %v2348
      %v2350 = vpop.f32.mrf.mxu0
      %v2351 = vadd.f32 0.0, %v2350
      %2352 = vmatmul.bf16.gmra.mxu0 %v2312
      %v2353 = vpop.f32.mrf.mxu0
      %v2354 = vadd.f32 0.0, %v2353
      %v2355 = vpop.f32.mrf.mxu0
      %v2356 = vadd.f32 0.0, %v2355
      %2357 = vmatmul.bf16.gmra.mxu0 %v2315
      %v2358 = vpop.f32.mrf.mxu0
      %v2359 = vadd.f32 0.0, %v2358
      %v2360 = vpop.f32.mrf.mxu0
      %v2361 = vadd.f32 0.0, %v2360
      %2362 = vmatmul.bf16.gmra.mxu0 %v2318
      %v2363 = vpop.f32.mrf.mxu0
      %v2364 = vadd.f32 0.0, %v2363
      %v2365 = vpop.f32.mrf.mxu0
      %v2366 = vadd.f32 0.0, %v2365
      %2367 = vmatmul.bf16.gmra.mxu0 %v2321
      %v2368 = vpop.f32.mrf.mxu0
      %v2369 = vadd.f32 0.0, %v2368
      %v2370 = vpop.f32.mrf.mxu0
      %v2371 = vadd.f32 0.0, %v2370
      %2372 = vmatmul.bf16.gmra.mxu0 %v2324
      %v2373 = vpop.f32.mrf.mxu0
      %v2374 = vadd.f32 0.0, %v2373
      %v2375 = vpop.f32.mrf.mxu0
      %v2376 = vadd.f32 0.0, %v2375
      %2377 = vdwg.mxu0
      %v2378 = vadd.f32 %v2068, %v2339
      %v2379 = vadd.f32 %v2069, %v2341
      %v2380 = vadd.f32 %v2070, %v2344
      %v2381 = vadd.f32 %v2071, %v2346
      %v2382 = vadd.f32 %v2072, %v2349
      %v2383 = vadd.f32 %v2073, %v2351
      %v2384 = vadd.f32 %v2074, %v2354
      %v2385 = vadd.f32 %v2075, %v2356
      %v2386 = vadd.f32 %v2076, %v2359
      %v2387 = vadd.f32 %v2077, %v2361
      %v2388 = vadd.f32 %v2078, %v2364
      %v2389 = vadd.f32 %v2079, %v2366
      %v2390 = vadd.f32 %v2080, %v2369
      %v2391 = vadd.f32 %v2081, %v2371
      %v2392 = vadd.f32 %v2082, %v2374
      %v2393 = vadd.f32 %v2083, %v2376
      %v2402 = vrot.slane %v1926, 5
      %v2403 = vrot.slane %v2402, 4
      %v2404 = vrot.slane %v1927, 5
      %v2405 = vsel %vm1100, %v2403, %v2404
      %v2406 = vrot.slane %v2404, 4
      %v2407 = vrot.slane %v1928, 5
      %v2408 = vsel %vm1100, %v2406, %v2407
      %v2409 = vrot.slane %v1929, 5
      %v2410 = vrot.slane %v2409, 4
      %v2411 = vrot.slane %v1930, 5
      %v2412 = vsel %vm1100, %v2410, %v2411
      %v2413 = vrot.slane %v2411, 4
      %v2414 = vrot.slane %v1931, 5
      %v2415 = vsel %vm1100, %v2413, %v2414
      %v2416 = vrot.slane %v1932, 5
      %v2417 = vrot.slane %v2416, 4
      %v2418 = vrot.slane %v1933, 5
      %v2419 = vsel %vm1100, %v2417, %v2418
      %v2420 = vrot.slane %v2418, 4
      %v2421 = vrot.slane %v1934, 5
      %v2422 = vsel %vm1100, %v2420, %v2421
      %v2423 = vrot.slane %v1935, 5
      %v2424 = vrot.slane %v2423, 4
      %v2425 = vrot.slane %v1936, 5
      %v2426 = vsel %vm1100, %v2424, %v2425
      %v2427 = vrot.slane %v2425, 4
      %v2428 = vrot.slane %v1937, 5
      %v2429 = vsel %vm1100, %v2427, %v2428
      %v2430 = vrot.slane %v1938, 5
      %v2431 = vrot.slane %v2430, 4
      %v2432 = vrot.slane %v1939, 5
      %v2433 = vsel %vm1100, %v2431, %v2432
      %v2434 = vrot.slane %v2432, 4
      %v2435 = vrot.slane %v1940, 5
      %v2436 = vsel %vm1100, %v2434, %v2435
      %v2437 = vrot.slane %v1941, 5
      %v2438 = vrot.slane %v2437, 4
      %v2439 = vrot.slane %v1942, 5
      %v2440 = vsel %vm1100, %v2438, %v2439
      %v2441 = vrot.slane %v2439, 4
      %v2442 = vrot.slane %v1943, 5
      %v2443 = vsel %vm1100, %v2441, %v2442
      %v2444 = vrot.slane %v1944, 5
      %v2445 = vrot.slane %v2444, 4
      %v2446 = vrot.slane %v1945, 5
      %v2447 = vsel %vm1100, %v2445, %v2446
      %v2448 = vrot.slane %v2446, 4
      %v2449 = vrot.slane %v1946, 5
      %v2450 = vsel %vm1100, %v2448, %v2449
      %v2451 = vrot.slane %v1947, 5
      %v2452 = vrot.slane %v2451, 4
      %v2453 = vrot.slane %v1948, 5
      %v2454 = vsel %vm1100, %v2452, %v2453
      %v2455 = vrot.slane %v2453, 4
      %v2456 = vrot.slane %v1949, 5
      %v2457 = vsel %vm1100, %v2455, %v2456
      %s2458 = scalar_lea.vmem %s472, 16
      %v2459 = vld [vmem:[%s2458] sm:$0x3]
      %v2460 = vunpack.c.l.b16 %v2405
      %v2461 = vunpack.c.l.b16 %v2408
      %v2462 = vunpack.c.l.b16 %v2412
      %v2463 = vunpack.c.l.b16 %v2415
      %v2464 = vunpack.c.l.b16 %v2419
      %v2465 = vunpack.c.l.b16 %v2422
      %v2466 = vunpack.c.l.b16 %v2426
      %v2467 = vunpack.c.l.b16 %v2429
      %v2468 = vunpack.c.l.b16 %v2433
      %v2469 = vunpack.c.l.b16 %v2436
      %v2470 = vunpack.c.l.b16 %v2440
      %v2471 = vunpack.c.l.b16 %v2443
      %v2472 = vunpack.c.l.b16 %v2447
      %v2473 = vunpack.c.l.b16 %v2450
      %v2474 = vunpack.c.l.b16 %v2454
      %v2475 = vunpack.c.l.b16 %v2457
      %v2476 = vpack.c.b16 %v2461, %v2460
      %v2477 = vpack.c.b16 %v2463, %v2462
      %v2478 = vpack.c.b16 %v2465, %v2464
      %v2479 = vpack.c.b16 %v2467, %v2466
      %v2480 = vpack.c.b16 %v2469, %v2468
      %v2481 = vpack.c.b16 %v2471, %v2470
      %v2482 = vpack.c.b16 %v2473, %v2472
      %v2483 = vpack.c.b16 %v2475, %v2474
      %v2485 = vsel %vm680, %v2476, 0
      %v2488 = vsel %vm680, %v2477, 0
      %v2491 = vsel %vm680, %v2478, 0
      %v2494 = vsel %vm680, %v2479, 0
      %v2497 = vsel %vm680, %v2480, 0
      %v2500 = vsel %vm680, %v2481, 0
      %v2503 = vsel %vm680, %v2482, 0
      %v2506 = vsel %vm680, %v2483, 0
      %v2509 = vand.u32 %v2459, %v708
      %2511 = vmatpush.bf16.msra.mxu0 0
      %2512 = vmatpush.bf16.msra.mxu0 0
      %2513 = vmatpush.bf16.msra.mxu0 0
      %2514 = vmatpush.bf16.msra.mxu0 0
      %2515 = vmatpush.bf16.msra.mxu0 0
      %2516 = vmatpush.bf16.msra.mxu0 0
      %2517 = vmatpush.bf16.msra.mxu0 0
      %2518 = vmatpush.bf16.msra.mxu0 %v2509
      %2519 = vmatmul.bf16.gmra.mxu0 %v2485
      %v2520 = vpop.f32.mrf.mxu0
      %v2521 = vadd.f32 0.0, %v2520
      %v2522 = vpop.f32.mrf.mxu0
      %v2523 = vadd.f32 0.0, %v2522
      %2524 = vmatmul.bf16.gmra.mxu0 %v2488
      %v2525 = vpop.f32.mrf.mxu0
      %v2526 = vadd.f32 0.0, %v2525
      %v2527 = vpop.f32.mrf.mxu0
      %v2528 = vadd.f32 0.0, %v2527
      %2529 = vmatmul.bf16.gmra.mxu0 %v2491
      %v2530 = vpop.f32.mrf.mxu0
      %v2531 = vadd.f32 0.0, %v2530
      %v2532 = vpop.f32.mrf.mxu0
      %v2533 = vadd.f32 0.0, %v2532
      %2534 = vmatmul.bf16.gmra.mxu0 %v2494
      %v2535 = vpop.f32.mrf.mxu0
      %v2536 = vadd.f32 0.0, %v2535
      %v2537 = vpop.f32.mrf.mxu0
      %v2538 = vadd.f32 0.0, %v2537
      %2539 = vmatmul.bf16.gmra.mxu0 %v2497
      %v2540 = vpop.f32.mrf.mxu0
      %v2541 = vadd.f32 0.0, %v2540
      %v2542 = vpop.f32.mrf.mxu0
      %v2543 = vadd.f32 0.0, %v2542
      %2544 = vmatmul.bf16.gmra.mxu0 %v2500
      %v2545 = vpop.f32.mrf.mxu0
      %v2546 = vadd.f32 0.0, %v2545
      %v2547 = vpop.f32.mrf.mxu0
      %v2548 = vadd.f32 0.0, %v2547
      %2549 = vmatmul.bf16.gmra.mxu0 %v2503
      %v2550 = vpop.f32.mrf.mxu0
      %v2551 = vadd.f32 0.0, %v2550
      %v2552 = vpop.f32.mrf.mxu0
      %v2553 = vadd.f32 0.0, %v2552
      %2554 = vmatmul.bf16.gmra.mxu0 %v2506
      %v2555 = vpop.f32.mrf.mxu0
      %v2556 = vadd.f32 0.0, %v2555
      %v2557 = vpop.f32.mrf.mxu0
      %v2558 = vadd.f32 0.0, %v2557
      %2559 = vdwg.mxu0
      %v2560 = vadd.f32 %v2378, %v2521
      %v2561 = vadd.f32 %v2379, %v2523
      %v2562 = vadd.f32 %v2380, %v2526
      %v2563 = vadd.f32 %v2381, %v2528
      %v2564 = vadd.f32 %v2382, %v2531
      %v2565 = vadd.f32 %v2383, %v2533
      %v2566 = vadd.f32 %v2384, %v2536
      %v2567 = vadd.f32 %v2385, %v2538
      %v2568 = vadd.f32 %v2386, %v2541
      %v2569 = vadd.f32 %v2387, %v2543
      %v2570 = vadd.f32 %v2388, %v2546
      %v2571 = vadd.f32 %v2389, %v2548
      %v2572 = vadd.f32 %v2390, %v2551
      %v2573 = vadd.f32 %v2391, %v2553
      %v2574 = vadd.f32 %v2392, %v2556
      %v2575 = vadd.f32 %v2393, %v2558
      %vm2576 = vcmask 523264
      %2577 = vst.msk [vmem:[#allocation3] sm:$0xff] %vm2576, %v2560
      %2578 = vst.msk [vmem:[#allocation3 + $0x8] sm:$0xff] %vm2576, %v2561
      %2579 = vst.msk [vmem:[#allocation3 + $0x10] sm:$0xff] %vm2576, %v2562
      %2580 = vst.msk [vmem:[#allocation3 + $0x18] sm:$0xff] %vm2576, %v2563
      %2581 = vst.msk [vmem:[#allocation3 + $0x20] sm:$0xff] %vm2576, %v2564
      %2582 = vst.msk [vmem:[#allocation3 + $0x28] sm:$0xff] %vm2576, %v2565
      %2583 = vst.msk [vmem:[#allocation3 + $0x30] sm:$0xff] %vm2576, %v2566
      %2584 = vst.msk [vmem:[#allocation3 + $0x38] sm:$0xff] %vm2576, %v2567
      %2585 = vst.msk [vmem:[#allocation3 + $0x40] sm:$0xff] %vm2576, %v2568
      %2586 = vst.msk [vmem:[#allocation3 + $0x48] sm:$0xff] %vm2576, %v2569
      %2587 = vst.msk [vmem:[#allocation3 + $0x50] sm:$0xff] %vm2576, %v2570
      %2588 = vst.msk [vmem:[#allocation3 + $0x58] sm:$0xff] %vm2576, %v2571
      %2589 = vst.msk [vmem:[#allocation3 + $0x60] sm:$0xff] %vm2576, %v2572
      %2590 = vst.msk [vmem:[#allocation3 + $0x68] sm:$0xff] %vm2576, %v2573
      %2591 = vst.msk [vmem:[#allocation3 + $0x70] sm:$0xff] %vm2576, %v2574
      %2592 = vst.msk [vmem:[#allocation3 + $0x78] sm:$0xff] %vm2576, %v2575
      // Predicated region
      $region61: #{tpu_custom_call.1} parent=39 // pred_check
        %p2593 = pneg %p491
      $region62: #{tpu_custom_call.1} parent=39 // pred_check_branch
        %2595 = sbr.rel (%p2593) target = $region64
      $region63: #{tpu_custom_call.1} parent=39 // pred_region
        %v2596 = vld [vmem:[#allocation3] sm:$0xff]
        %v2597 = vld [vmem:[#allocation3 + $0x8] sm:$0xff]
        %v2598 = vld [vmem:[#allocation3 + $0x10] sm:$0xff]
        %v2599 = vld [vmem:[#allocation3 + $0x18] sm:$0xff]
        %v2600 = vld [vmem:[#allocation3 + $0x20] sm:$0xff]
        %v2601 = vld [vmem:[#allocation3 + $0x28] sm:$0xff]
        %v2602 = vld [vmem:[#allocation3 + $0x30] sm:$0xff]
        %v2603 = vld [vmem:[#allocation3 + $0x38] sm:$0xff]
        %v2604 = vld [vmem:[#allocation3 + $0x40] sm:$0xff]
        %v2605 = vld [vmem:[#allocation3 + $0x48] sm:$0xff]
        %v2606 = vld [vmem:[#allocation3 + $0x50] sm:$0xff]
        %v2607 = vld [vmem:[#allocation3 + $0x58] sm:$0xff]
        %v2608 = vld [vmem:[#allocation3 + $0x60] sm:$0xff]
        %v2609 = vld [vmem:[#allocation3 + $0x68] sm:$0xff]
        %v2610 = vld [vmem:[#allocation3 + $0x70] sm:$0xff]
        %v2611 = vld [vmem:[#allocation3 + $0x78] sm:$0xff]
        %v2612 = vld [vmem:[%s475] sm:$0x1]
        %v2614 = vperm.slane %v2612, 0
        %v2616 = vadd.f32 %v2596, %v2614
        %v2617 = vadd.f32 %v2597, %v2614
        %v2618 = vadd.f32 %v2598, %v2614
        %v2619 = vadd.f32 %v2599, %v2614
        %v2620 = vadd.f32 %v2600, %v2614
        %v2621 = vadd.f32 %v2601, %v2614
        %v2622 = vadd.f32 %v2602, %v2614
        %v2623 = vadd.f32 %v2603, %v2614
        %v2624 = vadd.f32 %v2604, %v2614
        %v2625 = vadd.f32 %v2605, %v2614
        %v2626 = vadd.f32 %v2606, %v2614
        %v2627 = vadd.f32 %v2607, %v2614
        %v2628 = vadd.f32 %v2608, %v2614
        %v2629 = vadd.f32 %v2609, %v2614
        %v2630 = vadd.f32 %v2610, %v2614
        %v2631 = vadd.f32 %v2611, %v2614
        %v2632 = vmax.f32 %v2616, 0.0
        %v2633 = vmax.f32 %v2617, 0.0
        %v2634 = vmax.f32 %v2618, 0.0
        %v2635 = vmax.f32 %v2619, 0.0
        %v2636 = vmax.f32 %v2620, 0.0
        %v2637 = vmax.f32 %v2621, 0.0
        %v2638 = vmax.f32 %v2622, 0.0
        %v2639 = vmax.f32 %v2623, 0.0
        %v2640 = vmax.f32 %v2624, 0.0
        %v2641 = vmax.f32 %v2625, 0.0
        %v2642 = vmax.f32 %v2626, 0.0
        %v2643 = vmax.f32 %v2627, 0.0
        %v2644 = vmax.f32 %v2628, 0.0
        %v2645 = vmax.f32 %v2629, 0.0
        %v2646 = vmax.f32 %v2630, 0.0
        %v2647 = vmax.f32 %v2631, 0.0
        %v2648 = vpack.c.bf16 %v2632, %v2632
        %v2649 = vpack.c.bf16 %v2633, %v2633
        %v2650 = vpack.c.bf16 %v2634, %v2634
        %v2651 = vpack.c.bf16 %v2635, %v2635
        %v2652 = vpack.c.bf16 %v2636, %v2636
        %v2653 = vpack.c.bf16 %v2637, %v2637
        %v2654 = vpack.c.bf16 %v2638, %v2638
        %v2655 = vpack.c.bf16 %v2639, %v2639
        %v2656 = vpack.c.bf16 %v2640, %v2640
        %v2657 = vpack.c.bf16 %v2641, %v2641
        %v2658 = vpack.c.bf16 %v2642, %v2642
        %v2659 = vpack.c.bf16 %v2643, %v2643
        %v2660 = vpack.c.bf16 %v2644, %v2644
        %v2661 = vpack.c.bf16 %v2645, %v2645
        %v2662 = vpack.c.bf16 %v2646, %v2646
        %v2663 = vpack.c.bf16 %v2647, %v2647
        %vm2664 = vcmask 519168
        %2665 = vst.msk [vmem:[%s488] sm:$0xf] %vm2664, 0
        %2666 = vst.msk [vmem:[%s488 + $0x4] sm:$0xf] %vm2664, 0
        %vm2667 = vcmask 516096
        %2668 = vst.msk [vmem:[%s488 + $0x8] sm:$0x1] %vm2667, 0
        %2669 = vst.msk [vmem:[%s488 + $0xc] sm:$0xf] %vm2664, 0
        %2670 = vst.msk [vmem:[%s488 + $0x10] sm:$0xf] %vm2664, 0
        %2671 = vst.msk [vmem:[%s488 + $0x14] sm:$0x1] %vm2667, 0
        %2672 = vst.msk [vmem:[%s488 + $0x18] sm:$0xf] %vm2664, 0
        %2673 = vst.msk [vmem:[%s488 + $0x1c] sm:$0xf] %vm2664, 0
        %2674 = vst.msk [vmem:[%s488 + $0x20] sm:$0x1] %vm2667, 0
        %2675 = vst.msk [vmem:[%s488 + $0x24] sm:$0xf] %vm2664, 0
        %2676 = vst.msk [vmem:[%s488 + $0x28] sm:$0xf] %vm2664, 0
        %2677 = vst.msk [vmem:[%s488 + $0x2c] sm:$0x1] %vm2667, 0
        %2678 = vst.msk [vmem:[%s488 + $0x30] sm:$0xf] %vm2664, 0
        %2679 = vst.msk [vmem:[%s488 + $0x34] sm:$0xf] %vm2664, 0
        %2680 = vst.msk [vmem:[%s488 + $0x38] sm:$0x1] %vm2667, 0
        %2681 = vst.msk [vmem:[%s488 + $0x3c] sm:$0xf] %vm2664, 0
        %2682 = vst.msk [vmem:[%s488 + $0x40] sm:$0xf] %vm2664, 0
        %2683 = vst.msk [vmem:[%s488 + $0x44] sm:$0x1] %vm2667, 0
        %2684 = vst.msk [vmem:[%s488 + $0x48] sm:$0xf] %vm2664, 0
        %2685 = vst.msk [vmem:[%s488 + $0x4c] sm:$0xf] %vm2664, 0
        %2686 = vst.msk [vmem:[%s488 + $0x50] sm:$0x1] %vm2667, 0
        %2687 = vst.msk [vmem:[%s488 + $0x54] sm:$0xf] %vm2664, 0
        %2688 = vst.msk [vmem:[%s488 + $0x58] sm:$0xf] %vm2664, 0
        %2689 = vst.msk [vmem:[%s488 + $0x5c] sm:$0x1] %vm2667, 0
        %vm2690 = vsmask.f32 256
        %vm2691 = vsmask.f32 4368
        %vm2692 = vmor %vm2690, %vm2691
        %v2694 = vshrl.u32 %v2648, 16
        %v2696 = vrot.slane %v2694, 7
        %v2697 = vshll.u32 %v2648, 16
        %v2699 = vor.u32 %v2696, %v2697
        %v2700 = vrot.slane %v2696, 4
        %v2702 = vshrl.u32 %v2649, 16
        %v2704 = vrot.slane %v2702, 7
        %v2705 = vshll.u32 %v2649, 16
        %v2707 = vor.u32 %v2704, %v2705
        %v2708 = vsel %vm2692, %v2700, %v2707
        %v2709 = vrot.slane %v2704, 4
        %v2711 = vshrl.u32 %v2650, 16
        %v2713 = vrot.slane %v2711, 7
        %v2714 = vshll.u32 %v2650, 16
        %v2716 = vor.u32 %v2713, %v2714
        %v2717 = vrot.slane %v2713, 4
        %v2719 = vshrl.u32 %v2651, 16
        %v2721 = vrot.slane %v2719, 7
        %v2722 = vshll.u32 %v2651, 16
        %v2724 = vor.u32 %v2721, %v2722
        %v2725 = vsel %vm2692, %v2717, %v2724
        %v2726 = vrot.slane %v2721, 4
        %v2728 = vshrl.u32 %v2652, 16
        %v2730 = vrot.slane %v2728, 7
        %v2731 = vshll.u32 %v2652, 16
        %v2733 = vor.u32 %v2730, %v2731
        %v2734 = vrot.slane %v2730, 4
        %v2736 = vshrl.u32 %v2653, 16
        %v2738 = vrot.slane %v2736, 7
        %v2739 = vshll.u32 %v2653, 16
        %v2741 = vor.u32 %v2738, %v2739
        %v2742 = vsel %vm2692, %v2734, %v2741
        %v2743 = vrot.slane %v2738, 4
        %v2745 = vshrl.u32 %v2654, 16
        %v2747 = vrot.slane %v2745, 7
        %v2748 = vshll.u32 %v2654, 16
        %v2750 = vor.u32 %v2747, %v2748
        %v2751 = vrot.slane %v2747, 4
        %v2753 = vshrl.u32 %v2655, 16
        %v2755 = vrot.slane %v2753, 7
        %v2756 = vshll.u32 %v2655, 16
        %v2758 = vor.u32 %v2755, %v2756
        %v2759 = vsel %vm2692, %v2751, %v2758
        %v2760 = vrot.slane %v2755, 4
        %v2762 = vshrl.u32 %v2656, 16
        %v2764 = vrot.slane %v2762, 7
        %v2765 = vshll.u32 %v2656, 16
        %v2767 = vor.u32 %v2764, %v2765
        %v2768 = vrot.slane %v2764, 4
        %v2770 = vshrl.u32 %v2657, 16
        %v2772 = vrot.slane %v2770, 7
        %v2773 = vshll.u32 %v2657, 16
        %v2775 = vor.u32 %v2772, %v2773
        %v2776 = vsel %vm2692, %v2768, %v2775
        %v2777 = vrot.slane %v2772, 4
        %v2779 = vshrl.u32 %v2658, 16
        %v2781 = vrot.slane %v2779, 7
        %v2782 = vshll.u32 %v2658, 16
        %v2784 = vor.u32 %v2781, %v2782
        %v2785 = vrot.slane %v2781, 4
        %v2787 = vshrl.u32 %v2659, 16
        %v2789 = vrot.slane %v2787, 7
        %v2790 = vshll.u32 %v2659, 16
        %v2792 = vor.u32 %v2789, %v2790
        %v2793 = vsel %vm2692, %v2785, %v2792
        %v2794 = vrot.slane %v2789, 4
        %v2796 = vshrl.u32 %v2660, 16
        %v2798 = vrot.slane %v2796, 7
        %v2799 = vshll.u32 %v2660, 16
        %v2801 = vor.u32 %v2798, %v2799
        %v2802 = vrot.slane %v2798, 4
        %v2804 = vshrl.u32 %v2661, 16
        %v2806 = vrot.slane %v2804, 7
        %v2807 = vshll.u32 %v2661, 16
        %v2809 = vor.u32 %v2806, %v2807
        %v2810 = vsel %vm2692, %v2802, %v2809
        %v2811 = vrot.slane %v2806, 4
        %v2813 = vshrl.u32 %v2662, 16
        %v2815 = vrot.slane %v2813, 7
        %v2816 = vshll.u32 %v2662, 16
        %v2818 = vor.u32 %v2815, %v2816
        %v2819 = vrot.slane %v2815, 4
        %v2821 = vshrl.u32 %v2663, 16
        %v2823 = vrot.slane %v2821, 7
        %v2824 = vshll.u32 %v2663, 16
        %v2826 = vor.u32 %v2823, %v2824
        %v2827 = vsel %vm2692, %v2819, %v2826
        %v2828 = vrot.slane %v2823, 4
        %vm2853 = vcmask 519168
        %vm2854 = vsmask.f32 7938
        %vm2855 = vmand %vm2853, %vm2854
        %v2856 = vld [vmem:[%s488] sm:$0xf]
        %v2857 = vsel %vm2855, %v2699, %v2856
        %2858 = vst [vmem:[%s488] sm:$0xf] %v2857
        %2859 = vst.msk [vmem:[%s488 + $0x4] sm:$0xf] %vm2664, %v2708
        %vm2860 = vcmask 516096
        %vm2861 = vmand %vm2860, %vm2690
        %v2862 = vld [vmem:[%s488 + $0x8] sm:$0x1]
        %v2863 = vsel %vm2861, %v2709, %v2862
        %2864 = vst [vmem:[%s488 + $0x8] sm:$0x1] %v2863
        %v2865 = vld [vmem:[%s488 + $0xc] sm:$0xf]
        %v2866 = vsel %vm2855, %v2716, %v2865
        %2867 = vst [vmem:[%s488 + $0xc] sm:$0xf] %v2866
        %2868 = vst.msk [vmem:[%s488 + $0x10] sm:$0xf] %vm2664, %v2725
        %v2869 = vld [vmem:[%s488 + $0x14] sm:$0x1]
        %v2870 = vsel %vm2861, %v2726, %v2869
        %2871 = vst [vmem:[%s488 + $0x14] sm:$0x1] %v2870
        %v2872 = vld [vmem:[%s488 + $0x18] sm:$0xf]
        %v2873 = vsel %vm2855, %v2733, %v2872
        %2874 = vst [vmem:[%s488 + $0x18] sm:$0xf] %v2873
        %2875 = vst.msk [vmem:[%s488 + $0x1c] sm:$0xf] %vm2664, %v2742
        %v2876 = vld [vmem:[%s488 + $0x20] sm:$0x1]
        %v2877 = vsel %vm2861, %v2743, %v2876
        %2878 = vst [vmem:[%s488 + $0x20] sm:$0x1] %v2877
        %v2879 = vld [vmem:[%s488 + $0x24] sm:$0xf]
        %v2880 = vsel %vm2855, %v2750, %v2879
        %2881 = vst [vmem:[%s488 + $0x24] sm:$0xf] %v2880
        %2882 = vst.msk [vmem:[%s488 + $0x28] sm:$0xf] %vm2664, %v2759
        %v2883 = vld [vmem:[%s488 + $0x2c] sm:$0x1]
        %v2884 = vsel %vm2861, %v2760, %v2883
        %2885 = vst [vmem:[%s488 + $0x2c] sm:$0x1] %v2884
        %v2886 = vld [vmem:[%s488 + $0x30] sm:$0xf]
        %v2887 = vsel %vm2855, %v2767, %v2886
        %2888 = vst [vmem:[%s488 + $0x30] sm:$0xf] %v2887
        %2889 = vst.msk [vmem:[%s488 + $0x34] sm:$0xf] %vm2664, %v2776
        %v2890 = vld [vmem:[%s488 + $0x38] sm:$0x1]
        %v2891 = vsel %vm2861, %v2777, %v2890
        %2892 = vst [vmem:[%s488 + $0x38] sm:$0x1] %v2891
        %v2893 = vld [vmem:[%s488 + $0x3c] sm:$0xf]
        %v2894 = vsel %vm2855, %v2784, %v2893
        %2895 = vst [vmem:[%s488 + $0x3c] sm:$0xf] %v2894
        %2896 = vst.msk [vmem:[%s488 + $0x40] sm:$0xf] %vm2664, %v2793
        %v2897 = vld [vmem:[%s488 + $0x44] sm:$0x1]
        %v2898 = vsel %vm2861, %v2794, %v2897
        %2899 = vst [vmem:[%s488 + $0x44] sm:$0x1] %v2898
        %v2900 = vld [vmem:[%s488 + $0x48] sm:$0xf]
        %v2901 = vsel %vm2855, %v2801, %v2900
        %2902 = vst [vmem:[%s488 + $0x48] sm:$0xf] %v2901
        %2903 = vst.msk [vmem:[%s488 + $0x4c] sm:$0xf] %vm2664, %v2810
        %v2904 = vld [vmem:[%s488 + $0x50] sm:$0x1]
        %v2905 = vsel %vm2861, %v2811, %v2904
        %2906 = vst [vmem:[%s488 + $0x50] sm:$0x1] %v2905
        %v2907 = vld [vmem:[%s488 + $0x54] sm:$0xf]
        %v2908 = vsel %vm2855, %v2818, %v2907
        %2909 = vst [vmem:[%s488 + $0x54] sm:$0xf] %v2908
        %2910 = vst.msk [vmem:[%s488 + $0x58] sm:$0xf] %vm2664, %v2827
        %v2911 = vld [vmem:[%s488 + $0x5c] sm:$0x1]
        %v2912 = vsel %vm2861, %v2828, %v2911
        %2913 = vst [vmem:[%s488 + $0x5c] sm:$0x1] %v2912
      $region64: #{tpu_custom_call.1} parent=39 // pred_fallthru
        _
      %s2914 = smul.u32 8, %s23
      %p2915 = scmp.lt.s32.totalorder %s22, 1
      %s2916 = scalar_select %p2915, %s22, 1
      %p2917 = scmp.lt.s32.totalorder %s2914, 15
      %s2918 = scalar_select %p2917, %s2914, 15
      %p2919 = scmp.lt.s32.totalorder %s24, 0
      %s2920 = scalar_select %p2919, %s24, 0
      %s2921 = smul.addr %s2918, 3
      %s2922 = sadd.s32 %s2920, %s2921
      %s2923 = smul.addr %s2916, 48
      %s2924 = sadd.s32 %s2922, %s2923
      %s2925 = smul.addr %s2924, 4
      %s2926 = scalar_lea.vmem %s5, %s2925
      // Predicated region
      $region65: #{tpu_custom_call.1} parent=39 // pred_check
        %p2927 = pneg %p224
      $region66: #{tpu_custom_call.1} parent=39 // pred_check_branch
        %2929 = sbr.rel (%p2927) target = $region68
      $region67: #{tpu_custom_call.1} parent=39 // pred_region
        %s2930 = smul.u32 8, %s23
      $region68: #{tpu_custom_call.1} parent=39 // pred_fallthru
        _
    $region40: #{tpu_custom_call.1} parent=5 // pred_fallthru
      _
    %p2931 = scmp.le.s32.totalorder 2, %s11
    // Predicated region
    $region69: #{tpu_custom_call.1} parent=5 // pred_check
      %p2932 = pneg %p2931
    $region70: #{tpu_custom_call.1} parent=5 // pred_check_branch
      %2934 = sbr.rel (%p2932) target = $region72
    $region71: #{tpu_custom_call.1} parent=5 // pred_region
      %s2935 = ssub.s32 %s11, 2
      // Predicated region
      $region73: #{tpu_custom_call.1} parent=71 // pred_check
        %p2936 = pneg %p230
      $region74: #{tpu_custom_call.1} parent=71 // pred_check_branch
        %2938 = sbr.rel (%p2936) target = $region76
      $region75: #{tpu_custom_call.1} parent=71 // pred_region
        %s2939 = smul.u32 8, %s27
        %p2940 = scmp.lt.s32.totalorder %s26, 1
        %s2941 = scalar_select %p2940, %s26, 1
        %p2942 = scmp.lt.s32.totalorder %s2939, 15
        %s2943 = scalar_select %p2942, %s2939, 15
        %p2944 = scmp.lt.s32.totalorder %s28, 0
        %s2945 = scalar_select %p2944, %s28, 0
        %s2946 = smul.addr %s2943, 3
        %s2947 = sadd.s32 %s2945, %s2946
        %s2948 = smul.addr %s2941, 48
        %s2949 = sadd.s32 %s2947, %s2948
        %s2950 = smul.addr %s2949, 4
        %s2951 = scalar_lea.vmem %s5, %s2950
      $region76: #{tpu_custom_call.1} parent=71 // pred_fallthru
        _
    $region72: #{tpu_custom_call.1} parent=5 // pred_fallthru
      _
  $region6: #{tpu_custom_call.1} parent=0 // loop_footer
    %s15 = sadd.s32 1, %s11
  $region7: #{tpu_custom_call.1} parent=0 // loop_footer_branch
    %10 = sbr.rel target = $region3
  $region8: #{tpu_custom_call.1} parent=0 // loop_exit
    _

</llo_original>
